<compile_context>
chip_gen: v5e
topology: v5e:2x2
jax: 0.10.0
libtpu: 0.0.40
codegen_flags: <defaults>
</compile_context>

<pallas_src>
import functools
import math

import jax
import jax.numpy as jnp
from jax.experimental import pallas as pl
from jax.experimental.pallas import tpu as pltpu


# ------------------------------ helpers -------------------------------------

def _round_up(x, m):
    return ((x + m - 1) // m) * m


def _pick_tile(size, candidates):
    """Largest candidate <= size whose padding waste is <= ~12.5%."""
    for t in candidates:
        if t <= size and (_round_up(size, t) - size) <= max(size // 8, 0):
            return t
    return min(size, candidates[-1])


_VMEM_LIMIT = 48 * 1024 * 1024   # <= 64 MiB physical VMEM on v7x; ok on v5e/v6e
ACT_DTYPE = jnp.bfloat16         # activation dtype between layers


# --------------------------- Pallas kernels ----------------------------------

def _mm_kernel(a_ref, b_ref, bias_ref, o_ref, acc_ref, *, relu):
    @pl.when(pl.program_id(2) == 0)
    def _():
        acc_ref[...] = jnp.zeros_like(acc_ref)
    acc_ref[...] += jnp.dot(a_ref[...], b_ref[...],
                            preferred_element_type=jnp.float32)

    @pl.when(pl.program_id(2) == pl.num_programs(2) - 1)
    def _():
        out = acc_ref[...] + bias_ref[...]
        if relu:
            out = jnp.maximum(out, 0.0)
        o_ref[...] = out.astype(o_ref.dtype)


def _mm_res_kernel(a_ref, b_ref, bias_ref, res_ref, o_ref, acc_ref, *, relu):
    @pl.when(pl.program_id(2) == 0)
    def _():
        acc_ref[...] = jnp.zeros_like(acc_ref)
    acc_ref[...] += jnp.dot(a_ref[...], b_ref[...],
                            preferred_element_type=jnp.float32)

    @pl.when(pl.program_id(2) == pl.num_programs(2) - 1)
    def _():
        out = (acc_ref[...] + bias_ref[...]
               + res_ref[...].astype(jnp.float32))
        if relu:
            out = jnp.maximum(out, 0.0)
        o_ref[...] = out.astype(o_ref.dtype)


def _max9_kernel(x0, x1, x2, x3, x4, x5, x6, x7, x8, o_ref):
    m = jnp.maximum(x0[...], x1[...])
    m = jnp.maximum(m, x2[...])
    m = jnp.maximum(m, x3[...])
    m = jnp.maximum(m, x4[...])
    m = jnp.maximum(m, x5[...])
    m = jnp.maximum(m, x6[...])
    m = jnp.maximum(m, x7[...])
    m = jnp.maximum(m, x8[...])
    o_ref[...] = m


def _avgpool_kernel(x_ref, o_ref, *, scale):
    # x_ref: (N, HW, C), reduce the sublane (HW) axis in f32; C stays lane-dense.
    o_ref[...] = jnp.sum(x_ref[...].astype(jnp.float32), axis=1) * scale


# ----------------------- tiled matmul (conv engine) --------------------------

_MM_CACHE = {}


def pallas_matmul(a, b, bias, *, relu, residual=None, out_dtype=ACT_DTYPE):
    """out = relu?(a @ b + bias (+ residual)).

    a: (M, K) activations (cast to bf16 for the MXU)
    b: (K, N) folded conv/linear weight, bf16
    bias: (N,) f32
    residual: optional (M, N), fused into the epilogue (f32 add).
    Returns (M, N) in out_dtype.
    """
    M, K = a.shape
    Kb, N = b.shape
    assert Kb == K, (a.shape, b.shape)

    Mp8 = _round_up(M, 8)
    tm = _pick_tile(Mp8, (512, 256, 128, 64, 32, 16, 8))
    Mp = _round_up(Mp8, tm)

    Np128 = _round_up(N, 128)
    tn = _pick_tile(Np128, (512, 256, 128))
    Np = _round_up(Np128, tn)

    Kp = _round_up(K, 128)
    tk = next(t for t in (512, 256, 128) if Kp % t == 0)

    ap = jnp.pad(a.astype(jnp.bfloat16), ((0, Mp - M), (0, Kp - K)))
    bp = jnp.pad(b.astype(jnp.bfloat16), ((0, Kp - K), (0, Np - N)))
    biasp = jnp.pad(bias.astype(jnp.float32), (0, Np - N)).reshape(1, Np)

    has_res = residual is not None
    if has_res:
        resp = jnp.pad(residual, ((0, Mp - M), (0, Np - N)))
        res_dtype = resp.dtype
    else:
        res_dtype = None

    key = (Mp, Kp, Np, tm, tn, tk, bool(relu), has_res,
           str(out_dtype), str(res_dtype))
    if key not in _MM_CACHE:
        grid = (Mp // tm, Np // tn, Kp // tk)
        in_specs = [
            pl.BlockSpec((tm, tk), lambda i, j, k: (i, k)),
            pl.BlockSpec((tk, tn), lambda i, j, k: (k, j)),
            pl.BlockSpec((1, tn), lambda i, j, k: (0, j)),
        ]
        if has_res:
            in_specs.append(pl.BlockSpec((tm, tn), lambda i, j, k: (i, j)))
            kernel = functools.partial(_mm_res_kernel, relu=relu)
        else:
            kernel = functools.partial(_mm_kernel, relu=relu)
        out_bytes = jnp.dtype(out_dtype).itemsize
        res_bytes = jnp.dtype(res_dtype).itemsize if has_res else 0
        bytes_accessed = ((Mp * Kp + Kp * Np) * 2                 # bf16 A, B
                          + Mp * Np * (out_bytes + res_bytes)     # out (+res)
                          + Np * 4)                               # bias
        _MM_CACHE[key] = pl.pallas_call(
            kernel,
            out_shape=jax.ShapeDtypeStruct((Mp, Np), out_dtype),
            grid=grid,
            in_specs=in_specs,
            out_specs=pl.BlockSpec((tm, tn), lambda i, j, k: (i, j)),
            scratch_shapes=[pltpu.VMEM((tm, tn), jnp.float32)],
            compiler_params=pltpu.CompilerParams(
                dimension_semantics=("parallel", "parallel", "arbitrary"),
                vmem_limit_bytes=_VMEM_LIMIT,
            ),
            cost_estimate=pl.CostEstimate(
                flops=int(2 * Mp * Np * Kp),
                transcendentals=0,
                bytes_accessed=int(bytes_accessed),
            ),
        )
    fn = _MM_CACHE[key]
    out = fn(ap, bp, biasp, resp) if has_res else fn(ap, bp, biasp)
    return out[:M, :N]


# ------------------------------ conv / pool ----------------------------------

def _im2col_nhwc(x, kh, kw, stride, pad):
    N, H, W, C = x.shape
    OH = (H + 2 * pad - kh) // stride + 1
    OW = (W + 2 * pad - kw) // stride + 1
    xp = jnp.pad(x, ((0, 0), (pad, pad), (pad, pad), (0, 0)))
    cols = []
    for i in range(kh):
        for j in range(kw):
            cols.append(xp[:, i:i + stride * OH:stride,
                           j:j + stride * OW:stride, :])
    patches = jnp.concatenate(cols, axis=-1)          # (N, OH, OW, kh*kw*C)
    return patches.reshape(N * OH * OW, kh * kw * C), OH, OW


def conv_bn(x, wmat, bias, *, ksize, stride, pad, relu, residual=None,
            out_dtype=ACT_DTYPE):
    """Fused conv + folded-BN (+ residual) (+ ReLU) on NHWC input."""
    N, H, W, C = x.shape
    if ksize == 1:
        if stride > 1:
            x = x[:, ::stride, ::stride, :]
        _, OH, OW, _ = x.shape
        a = x.reshape(N * OH * OW, C)
    else:
        a, OH, OW = _im2col_nhwc(x, ksize, ksize, stride, pad)
    Cout = wmat.shape[1]
    res2d = None
    if residual is not None:
        res2d = residual.reshape(N * OH * OW, Cout)
    out = pallas_matmul(a, wmat, bias, relu=relu, residual=res2d,
                        out_dtype=out_dtype)
    return out.reshape(N, OH, OW, Cout)


_MAX_CACHE = {}


def maxpool_3x3_s2_p1(x):
    N, H, W, C = x.shape
    k, s, p = 3, 2, 1
    OH = (H + 2 * p - k) // s + 1
    OW = (W + 2 * p - k) // s + 1
    neg = float(jnp.finfo(x.dtype).min)
    xp = jnp.pad(x, ((0, 0), (p, p), (p, p), (0, 0)), constant_values=neg)
    R, Ccols = N * OH, OW * C                     # lane-dense layout
    Rp = _round_up(R, 8)
    views = []
    for i in range(k):
        for j in range(k):
            v = xp[:, i:i + s * OH:s, j:j + s * OW:s, :].reshape(R, Ccols)
            views.append(jnp.pad(v, ((0, Rp - R), (0, 0))))

    key = (Rp, Ccols, str(x.dtype))
    if key not in _MAX_CACHE:
        tr = min(Rp, 512)
        while Rp % tr:
            tr -= 8
        _MAX_CACHE[key] = pl.pallas_call(
            _max9_kernel,
            out_shape=jax.ShapeDtypeStruct((Rp, Ccols), x.dtype),
            grid=(Rp // tr,),
            in_specs=[pl.BlockSpec((tr, Ccols), lambda r: (r, 0))] * 9,
            out_specs=pl.BlockSpec((tr, Ccols), lambda r: (r, 0)),
            compiler_params=pltpu.CompilerParams(
                dimension_semantics=("parallel",),
                vmem_limit_bytes=_VMEM_LIMIT,
            ),
        )
    out = _MAX_CACHE[key](*views)
    return out[:R].reshape(N, OH, OW, C)


_AVG_CACHE = {}


def global_avgpool(x):
    # nn.AdaptiveAvgPool2d((1,1)) + .view(N, -1) on NHWC input -> (N, C) f32
    N, H, W, C = x.shape
    hw = H * W
    xr = x.reshape(N, hw, C)
    key = (N, hw, C, str(x.dtype))
    if key not in _AVG_CACHE:
        _AVG_CACHE[key] = pl.pallas_call(
            functools.partial(_avgpool_kernel, scale=1.0 / hw),
            out_shape=jax.ShapeDtypeStruct((N, C), jnp.float32),
            grid=(1,),
            in_specs=[pl.BlockSpec((N, hw, C), lambda i: (0, 0, 0))],
            out_specs=pl.BlockSpec((N, C), lambda i: (0, 0)),
            compiler_params=pltpu.CompilerParams(
                dimension_semantics=("arbitrary",),
                vmem_limit_bytes=_VMEM_LIMIT,
            ),
        )
    return _AVG_CACHE[key](xr)


# ----------------------------- parameter setup -------------------------------

class ParamGen:
    def __init__(self, seed=0):
        self.key = jax.random.PRNGKey(seed)
        self.count = 0

    def normal(self, shape, std=1.0):
        self.count += 1
        k = jax.random.fold_in(self.key, self.count)
        return std * jax.random.normal(k, shape, dtype=jnp.float32)


def _fold_bn(w, gamma, beta, mean, var, eps=1e-5):
    scale = gamma / jnp.sqrt(var + eps)
    return w * scale[:, None, None, None], beta - mean * scale


def make_conv_bn(pg, cin, cout, k, gamma_val=1.0):
    w = pg.normal((cout, cin, k, k), std=math.sqrt(2.0 / (cin * k * k)))
    gamma = jnp.full((cout,), gamma_val, jnp.float32)
    beta = pg.normal((cout,), std=0.01)
    mean = pg.normal((cout,), std=0.01)
    var = jnp.ones((cout,), jnp.float32)
    w, b = _fold_bn(w, gamma, beta, mean, var)
    # (Cout, Cin, kh, kw) -> (kh, kw, Cin, Cout) -> (kh*kw*Cin, Cout), bf16 MXU
    wmat = jnp.transpose(w, (2, 3, 1, 0)).reshape(k * k * cin, cout)
    return wmat.astype(jnp.bfloat16), b.astype(jnp.float32)


def init_params(embed_size=32, seed=0):
    pg = ParamGen(seed)
    params = {"stem": make_conv_bn(pg, 3, 64, 7)}
    layers_cfg = [(64, 3, 1), (128, 8, 2), (256, 36, 2), (512, 3, 2)]  # resnet152
    inplanes = 64
    layers = []
    for planes, nblocks, stride in layers_cfg:
        block0 = {
            "conv1": make_conv_bn(pg, inplanes, planes, 1),
            "conv2": make_conv_bn(pg, planes, planes, 3),
            "conv3": make_conv_bn(pg, planes, planes * 4, 1, gamma_val=0.2),
            "down": make_conv_bn(pg, inplanes, planes * 4, 1),
            "stride": stride,
        }
        inplanes = planes * 4
        rest = []
        for _ in range(nblocks - 1):
            rest.append({
                "conv1": make_conv_bn(pg, inplanes, planes, 1),
                "conv2": make_conv_bn(pg, planes, planes, 3),
                "conv3": make_conv_bn(pg, planes, planes * 4, 1, gamma_val=0.2),
            })
        if rest:
            stacked = tuple(
                jnp.stack([blk[name][idx] for blk in rest])
                for name in ("conv1", "conv2", "conv3") for idx in (0, 1)
            )
        else:
            stacked = None
        layers.append({"block0": block0, "rest": stacked})
    params["layers"] = layers
    # embed: Linear(2048 -> embed_size); store weight as (2048, embed) bf16
    w = pg.normal((embed_size, 2048), std=1.0 / math.sqrt(2048.0))
    b = pg.normal((embed_size,), std=0.01)
    params["embed"] = (jnp.transpose(w).astype(jnp.bfloat16),
                       b.astype(jnp.float32))
    return params


# ------------------------------- forward pass --------------------------------

@jax.jit
def _jit_stem(images, wmat, bias):
    x = jnp.transpose(images, (0, 2, 3, 1))        # NCHW -> NHWC (once, tiny)
    x = conv_bn(x, wmat, bias, ksize=7, stride=2, pad=3, relu=True)
    return maxpool_3x3_s2_p1(x)


@functools.partial(jax.jit, static_argnames=("stride",))
def _jit_block0(x, c1, c2, c3, down, *, stride):
    out = conv_bn(x, *c1, ksize=1, stride=1, pad=0, relu=True)
    out = conv_bn(out, *c2, ksize=3, stride=stride, pad=1, relu=True)
    identity = conv_bn(x, *down, ksize=1, stride=stride, pad=0, relu=False)
    # residual add + ReLU fused into the conv3 matmul epilogue
    return conv_bn(out, *c3, ksize=1, stride=1, pad=0, relu=True,
                   residual=identity)


@jax.jit
def _jit_identity_blocks(x, stacked):
    """Stride-1, no-downsample bottlenecks of one stage as a single scan."""
    def body(h, p):
        c1w, c1b, c2w, c2b, c3w, c3b = p
        out = conv_bn(h, c1w, c1b, ksize=1, stride=1, pad=0, relu=True)
        out = conv_bn(out, c2w, c2b, ksize=3, stride=1, pad=1, relu=True)
        out = conv_bn(out, c3w, c3b, ksize=1, stride=1, pad=0, relu=True,
                      residual=h)
        return out, None
    x, _ = jax.lax.scan(body, x, stacked)
    return x


@jax.jit
def _jit_head(x, wmat, bias):
    feats = global_avgpool(x)                      # (N, 2048) == .view(N, -1)
    return pallas_matmul(feats, wmat, bias, relu=False,
                         out_dtype=jnp.float32)    # (N, embed_size)


def encoder_forward(params, images):
    x = _jit_stem(images, *params["stem"])
    for layer in params["layers"]:
        b0 = layer["block0"]
        x = _jit_block0(x, b0["conv1"], b0["conv2"], b0["conv3"], b0["down"],
                        stride=b0["stride"])
        if layer["rest"] is not None:
            x = _jit_identity_blocks(x, layer["rest"])
    return _jit_head(x, *params["embed"])


# ----------------------------------- main -------------------------------------

if __name__ == "__main__":
    embed_size = 32
    params = init_params(embed_size=embed_size, seed=0)
    images = jax.random.normal(jax.random.PRNGKey(0), (2, 3, 64, 64),
                               dtype=jnp.float32)
    features = encoder_forward(params, images)
    features = jax.block_until_ready(features)
    assert features.shape == (2, embed_size), features.shape
    assert bool(jnp.isfinite(features).all())
    print("KERNEL_OK")
</pallas_src>

<mosaic_0001>
module attributes {stable_mosaic.version = 11 : i64} {
  func.func @_mm_kernel(%arg0: i32, %arg1: i32, %arg2: i32, %arg3: memref<512x256xbf16, #tpu.memory_space<vmem>>, %arg4: memref<256x128xbf16, #tpu.memory_space<vmem>>, %arg5: memref<1x128xf32, #tpu.memory_space<vmem>>, %arg6: memref<512x128xbf16, #tpu.memory_space<vmem>>, %arg7: memref<512x128xf32, #tpu.memory_space<vmem>>) attributes {dimension_semantics = [#tpu.dimension_semantics<parallel>, #tpu.dimension_semantics<parallel>, #tpu.dimension_semantics<arbitrary>], iteration_bounds = array<i64: 4, 1, 1>, scalar_prefetch = 0 : i64, scratch_operands = 1 : i64, tpu.core_type = #tpu.core_type<tc>, window_params = [{transform_indices = @transform_0, window_bounds = array<i64: 512, 256>}, {transform_indices = @transform_1, window_bounds = array<i64: 256, 128>}, {transform_indices = @transform_2, window_bounds = array<i64: 1, 128>}, {transform_indices = @transform_3, window_bounds = array<i64: 512, 128>}]} {
    %c0_i32 = arith.constant 0 : i32
    %0 = arith.cmpi eq, %arg2, %c0_i32 : i32
    %1 = arith.extui %0 : i1 to i32
    %c0_i32_0 = arith.constant 0 : i32
    %2 = arith.cmpi ne, %1, %c0_i32_0 : i32
    scf.if %2 {
      %cst_10 = arith.constant 0.000000e+00 : f32
      %12 = vector.broadcast %cst_10 : f32 to vector<512x128xf32>
      %c0_11 = arith.constant 0 : index
      %c0_12 = arith.constant 0 : index
      %13 = vector.load %arg7[%c0_11, %c0_12] : memref<512x128xf32, #tpu.memory_space<vmem>>, vector<512x128xf32>
      tpu.vector_store %arg7[%c0_11, %c0_12], %12 {strides = array<i32>} : memref<512x128xf32, #tpu.memory_space<vmem>>, vector<512x128xf32>,
    } else {
    }
    %c0 = arith.constant 0 : index
    %c0_1 = arith.constant 0 : index
    %3 = vector.load %arg7[%c0, %c0_1] : memref<512x128xf32, #tpu.memory_space<vmem>>, vector<512x128xf32>
    %c0_2 = arith.constant 0 : index
    %c0_3 = arith.constant 0 : index
    %4 = vector.load %arg3[%c0_2, %c0_3] : memref<512x256xbf16, #tpu.memory_space<vmem>>, vector<512x256xbf16>
    %c0_4 = arith.constant 0 : index
    %c0_5 = arith.constant 0 : index
    %5 = vector.load %arg4[%c0_4, %c0_5] : memref<256x128xbf16, #tpu.memory_space<vmem>>, vector<256x128xbf16>
    %cst = arith.constant dense<0.000000e+00> : vector<512x128xf32>
    %6 = tpu.matmul %4, %5, %cst {dimension_numbers = #tpu.dot_dimension_numbers<[1], [0], [0], [1], [0, 0, 1, 1], [], []>} : vector<512x256xbf16>, vector<256x128xbf16>, vector<512x128xf32> -> vector<512x128xf32>
    %7 = arith.addf %3, %6 : vector<512x128xf32>
    %c0_6 = arith.constant 0 : index
    %c0_7 = arith.constant 0 : index
    %8 = vector.load %arg7[%c0_6, %c0_7] : memref<512x128xf32, #tpu.memory_space<vmem>>, vector<512x128xf32>
    tpu.vector_store %arg7[%c0_6, %c0_7], %7 {strides = array<i32>} : memref<512x128xf32, #tpu.memory_space<vmem>>, vector<512x128xf32>,
    %c0_i32_8 = arith.constant 0 : i32
    %9 = arith.cmpi eq, %arg2, %c0_i32_8 : i32
    %10 = arith.extui %9 : i1 to i32
    %c0_i32_9 = arith.constant 0 : i32
    %11 = arith.cmpi ne, %10, %c0_i32_9 : i32
    scf.if %11 {
      %c0_10 = arith.constant 0 : index
      %c0_11 = arith.constant 0 : index
      %12 = vector.load %arg7[%c0_10, %c0_11] : memref<512x128xf32, #tpu.memory_space<vmem>>, vector<512x128xf32>
      %c0_12 = arith.constant 0 : index
      %c0_13 = arith.constant 0 : index
      %13 = vector.load %arg5[%c0_12, %c0_13] : memref<1x128xf32, #tpu.memory_space<vmem>>, vector<1x128xf32>
      %14 = vector.broadcast %13 : vector<1x128xf32> to vector<512x128xf32>
      %15 = arith.addf %12, %14 : vector<512x128xf32>
      %cst_14 = arith.constant 0.000000e+00 : f32
      %16 = vector.broadcast %cst_14 : f32 to vector<512x128xf32>
      %17 = arith.maximumf %15, %16 : vector<512x128xf32>
      %18 = arith.truncf %17 : vector<512x128xf32> to vector<512x128xbf16>
      %c0_15 = arith.constant 0 : index
      %c0_16 = arith.constant 0 : index
      %19 = vector.load %arg6[%c0_15, %c0_16] : memref<512x128xbf16, #tpu.memory_space<vmem>>, vector<512x128xbf16>
      tpu.vector_store %arg6[%c0_15, %c0_16], %18 {strides = array<i32>} : memref<512x128xbf16, #tpu.memory_space<vmem>>, vector<512x128xbf16>,
    } else {
    }
    return
  }
  func.func @transform_0(%arg0: i32, %arg1: i32, %arg2: i32) -> (i32, i32) {
    %c0_i32 = arith.constant 0 : i32
    return %arg0, %arg2 : i32, i32
  }
  func.func @transform_1(%arg0: i32, %arg1: i32, %arg2: i32) -> (i32, i32) {
    %c0_i32 = arith.constant 0 : i32
    return %arg2, %arg1 : i32, i32
  }
  func.func @transform_2(%arg0: i32, %arg1: i32, %arg2: i32) -> (i32, i32) {
    %c0_i32 = arith.constant 0 : i32
    %c0_i32_0 = arith.constant 0 : i32
    return %c0_i32, %arg1 : i32, i32
  }
  func.func @transform_3(%arg0: i32, %arg1: i32, %arg2: i32) -> (i32, i32) {
    %c0_i32 = arith.constant 0 : i32
    return %arg0, %arg1 : i32, i32
  }
}

module attributes {stable_mosaic.version = 11 : i64} {
  func.func @_max9_kernel(%arg0: i32, %arg1: memref<32x1024xbf16, #tpu.memory_space<vmem>>, %arg2: memref<32x1024xbf16, #tpu.memory_space<vmem>>, %arg3: memref<32x1024xbf16, #tpu.memory_space<vmem>>, %arg4: memref<32x1024xbf16, #tpu.memory_space<vmem>>, %arg5: memref<32x1024xbf16, #tpu.memory_space<vmem>>, %arg6: memref<32x1024xbf16, #tpu.memory_space<vmem>>, %arg7: memref<32x1024xbf16, #tpu.memory_space<vmem>>, %arg8: memref<32x1024xbf16, #tpu.memory_space<vmem>>, %arg9: memref<32x1024xbf16, #tpu.memory_space<vmem>>, %arg10: memref<32x1024xbf16, #tpu.memory_space<vmem>>) attributes {dimension_semantics = [#tpu.dimension_semantics<parallel>], iteration_bounds = array<i64: 1>, scalar_prefetch = 0 : i64, scratch_operands = 0 : i64, tpu.core_type = #tpu.core_type<tc>, window_params = [{transform_indices = @transform_0, window_bounds = array<i64: 32, 1024>}, {transform_indices = @transform_1, window_bounds = array<i64: 32, 1024>}, {transform_indices = @transform_2, window_bounds = array<i64: 32, 1024>}, {transform_indices = @transform_3, window_bounds = array<i64: 32, 1024>}, {transform_indices = @transform_4, window_bounds = array<i64: 32, 1024>}, {transform_indices = @transform_5, window_bounds = array<i64: 32, 1024>}, {transform_indices = @transform_6, window_bounds = array<i64: 32, 1024>}, {transform_indices = @transform_7, window_bounds = array<i64: 32, 1024>}, {transform_indices = @transform_8, window_bounds = array<i64: 32, 1024>}, {transform_indices = @transform_9, window_bounds = array<i64: 32, 1024>}]} {
    %c0 = arith.constant 0 : index
    %c0_0 = arith.constant 0 : index
    %0 = vector.load %arg1[%c0, %c0_0] : memref<32x1024xbf16, #tpu.memory_space<vmem>>, vector<32x1024xbf16>
    %c0_1 = arith.constant 0 : index
    %c0_2 = arith.constant 0 : index
    %1 = vector.load %arg2[%c0_1, %c0_2] : memref<32x1024xbf16, #tpu.memory_space<vmem>>, vector<32x1024xbf16>
    %2 = arith.maximumf %0, %1 : vector<32x1024xbf16>
    %c0_3 = arith.constant 0 : index
    %c0_4 = arith.constant 0 : index
    %3 = vector.load %arg3[%c0_3, %c0_4] : memref<32x1024xbf16, #tpu.memory_space<vmem>>, vector<32x1024xbf16>
    %4 = arith.maximumf %2, %3 : vector<32x1024xbf16>
    %c0_5 = arith.constant 0 : index
    %c0_6 = arith.constant 0 : index
    %5 = vector.load %arg4[%c0_5, %c0_6] : memref<32x1024xbf16, #tpu.memory_space<vmem>>, vector<32x1024xbf16>
    %6 = arith.maximumf %4, %5 : vector<32x1024xbf16>
    %c0_7 = arith.constant 0 : index
    %c0_8 = arith.constant 0 : index
    %7 = vector.load %arg5[%c0_7, %c0_8] : memref<32x1024xbf16, #tpu.memory_space<vmem>>, vector<32x1024xbf16>
    %8 = arith.maximumf %6, %7 : vector<32x1024xbf16>
    %c0_9 = arith.constant 0 : index
    %c0_10 = arith.constant 0 : index
    %9 = vector.load %arg6[%c0_9, %c0_10] : memref<32x1024xbf16, #tpu.memory_space<vmem>>, vector<32x1024xbf16>
    %10 = arith.maximumf %8, %9 : vector<32x1024xbf16>
    %c0_11 = arith.constant 0 : index
    %c0_12 = arith.constant 0 : index
    %11 = vector.load %arg7[%c0_11, %c0_12] : memref<32x1024xbf16, #tpu.memory_space<vmem>>, vector<32x1024xbf16>
    %12 = arith.maximumf %10, %11 : vector<32x1024xbf16>
    %c0_13 = arith.constant 0 : index
    %c0_14 = arith.constant 0 : index
    %13 = vector.load %arg8[%c0_13, %c0_14] : memref<32x1024xbf16, #tpu.memory_space<vmem>>, vector<32x1024xbf16>
    %14 = arith.maximumf %12, %13 : vector<32x1024xbf16>
    %c0_15 = arith.constant 0 : index
    %c0_16 = arith.constant 0 : index
    %15 = vector.load %arg9[%c0_15, %c0_16] : memref<32x1024xbf16, #tpu.memory_space<vmem>>, vector<32x1024xbf16>
    %16 = arith.maximumf %14, %15 : vector<32x1024xbf16>
    %c0_17 = arith.constant 0 : index
    %c0_18 = arith.constant 0 : index
    %17 = vector.load %arg10[%c0_17, %c0_18] : memref<32x1024xbf16, #tpu.memory_space<vmem>>, vector<32x1024xbf16>
    tpu.vector_store %arg10[%c0_17, %c0_18], %16 {strides = array<i32>} : memref<32x1024xbf16, #tpu.memory_space<vmem>>, vector<32x1024xbf16>,
    return
  }
  func.func @transform_0(%arg0: i32) -> (i32, i32) {
    %c0_i32 = arith.constant 0 : i32
    %c0_i32_0 = arith.constant 0 : i32
    return %arg0, %c0_i32 : i32, i32
  }
  func.func @transform_1(%arg0: i32) -> (i32, i32) {
    %c0_i32 = arith.constant 0 : i32
    %c0_i32_0 = arith.constant 0 : i32
    return %arg0, %c0_i32 : i32, i32
  }
  func.func @transform_2(%arg0: i32) -> (i32, i32) {
    %c0_i32 = arith.constant 0 : i32
    %c0_i32_0 = arith.constant 0 : i32
    return %arg0, %c0_i32 : i32, i32
  }
  func.func @transform_3(%arg0: i32) -> (i32, i32) {
    %c0_i32 = arith.constant 0 : i32
    %c0_i32_0 = arith.constant 0 : i32
    return %arg0, %c0_i32 : i32, i32
  }
  func.func @transform_4(%arg0: i32) -> (i32, i32) {
    %c0_i32 = arith.constant 0 : i32
    %c0_i32_0 = arith.constant 0 : i32
    return %arg0, %c0_i32 : i32, i32
  }
  func.func @transform_5(%arg0: i32) -> (i32, i32) {
    %c0_i32 = arith.constant 0 : i32
    %c0_i32_0 = arith.constant 0 : i32
    return %arg0, %c0_i32 : i32, i32
  }
  func.func @transform_6(%arg0: i32) -> (i32, i32) {
    %c0_i32 = arith.constant 0 : i32
    %c0_i32_0 = arith.constant 0 : i32
    return %arg0, %c0_i32 : i32, i32
  }
  func.func @transform_7(%arg0: i32) -> (i32, i32) {
    %c0_i32 = arith.constant 0 : i32
    %c0_i32_0 = arith.constant 0 : i32
    return %arg0, %c0_i32 : i32, i32
  }
  func.func @transform_8(%arg0: i32) -> (i32, i32) {
    %c0_i32 = arith.constant 0 : i32
    %c0_i32_0 = arith.constant 0 : i32
    return %arg0, %c0_i32 : i32, i32
  }
  func.func @transform_9(%arg0: i32) -> (i32, i32) {
    %c0_i32 = arith.constant 0 : i32
    %c0_i32_0 = arith.constant 0 : i32
    return %arg0, %c0_i32 : i32, i32
  }
}

</mosaic_0001>

<llo_original>
// kernel: _jit_stem.2
$region0: #{_jit_stem.2}
  #allocation0 [shape = 'u32[]', space=smem, size = 0x4, offset = 0x4, fixed_abs, tag = 'smem constant byte address 0x4 - core index']
  #allocation1 [shape = 'u32[72,128]{1,0:T(1,128)}', space=vmem, size = 0x9000, scoped, tag = 'internal scratch']
  #allocation2 [shape = 'f32[512,128]{1,0:T(8,128)}', space=vmem, size = 0x40000, scoped, tag = 'scratch operand']
  %s0 = inlined_call_operand.vmem [shape: bf16[2048,256], index: 0, kind: input, shape index: {}]
  %s1 = inlined_call_operand.vmem [shape: bf16[256,128], index: 1, kind: input, shape index: {}]
  %s2 = inlined_call_operand.vmem [shape: f32[1,128], index: 2, kind: input, shape index: {}]
  %s3 = inlined_call_operand.vmem [shape: bf16[2048,128], index: 3, kind: output, shape index: {}]
  %s4 = sld [smem:[#allocation0]]
  $region53: #{_jit_stem.2} parent=0
    _
  %s6 = ssub.s32 1, %s4
  %s7 = scalar_select 0, %s6, %s4
  loop: start=0, step=1, limit=6
  $region2: #{_jit_stem.2} parent=0 // loop_pre_header
    _
  $region3: #{_jit_stem.2} parent=0 // loop_header
    %s9 = sphi 0, %s13
    %p10 = scmp.ge.s32.totalorder %s9, 6
    %s16 = sphi 0, %s35
    %s17 = sphi 0, %s31
    %s18 = sphi 0, %s27
    %s19 = sphi 0, %s16
    %s20 = sphi 0, %s17
    %s21 = sphi 0, %s18
    %s22 = sphi 0, %s19
    %s23 = sphi 0, %s20
    %s24 = sphi 0, %s21
    %s40 = sphi 0, %s42
    %s43 = sphi 0, %s40
    %s44 = sphi 0, %s43
    %s60 = sphi 0, %s44
    %s68 = sphi 0, %s70
    %s71 = sphi 0, %s68
    %s72 = sphi 0, %s71
    %s88 = sphi 0, %s72
    %s94 = sphi 0, %s96
    %s97 = sphi 0, %s94
    %s98 = sphi 0, %s97
    %s114 = sphi 0, %s98
    %s122 = sphi 0, %s124
    %s125 = sphi 0, %s122
    %s126 = sphi 0, %s125
    %s142 = sphi 0, %s126
  $region4: #{_jit_stem.2} parent=0 // loop_header_branch
    %12 = sbr.rel (%p10) target = $region8
  $region5: #{_jit_stem.2} parent=0 // loop_body
    %s14 = ssub.s32 %s9, 1
    %s15 = ssub.s32 %s9, 2
    %s25 = sadd.s32 1, %s18
    %p26 = scmp.ge.s32.totalorder %s25, 1
    %s27 = scalar_select %p26, 0, %s25
    %s28 = sadd.s32 1, %s17
    %s29 = scalar_select %p26, %s28, %s17
    %p30 = scmp.ge.s32.totalorder %s29, 1
    %s31 = scalar_select %p30, 0, %s29
    %s32 = sadd.s32 1, %s16
    %s33 = scalar_select %p30, %s32, %s16
    %p34 = scmp.ge.s32.totalorder %s33, 4
    %s35 = scalar_select %p34, 0, %s33
    %s36 = ssub.s32 %s16, %s35
    %s37 = ssub.s32 %s18, %s27
    %s38 = sor.u32 %s36, %s37
    %p39 = scmp.eq.s32.totalorder %s38, 0
    %s41 = sadd.s32 %s40, 1
    %s42 = scalar_select %p39, %s40, %s41
    %p45 = pneg %p39
    %p46 = scmp.eq.s32.totalorder %s9, 3
    %p47 = por %p45, %p46
    %p48 = scmp.ne.s32.totalorder %s40, %s43
    %p49 = scmp.eq.s32.totalorder %s9, 0
    %p50 = por %p48, %p49
    %p51 = scmp.ne.s32.totalorder %s40, %s43
    %p52 = scmp.eq.s32.totalorder %s14, 3
    %p53 = por %p51, %p52
    %p54 = scmp.ne.s32.totalorder %s43, %s44
    %p55 = scmp.eq.s32.totalorder %s14, 0
    %p56 = por %p54, %p55
    %p57 = scmp.ne.s32.totalorder %s43, %s44
    %p58 = scmp.eq.s32.totalorder %s15, 3
    %p59 = por %p57, %p58
    %p61 = scmp.ne.s32.totalorder %s44, %s60
    %p62 = scmp.eq.s32.totalorder %s15, 0
    %p63 = por %p61, %p62
    %s64 = ssub.s32 %s18, %s27
    %s65 = ssub.s32 %s17, %s31
    %s66 = sor.u32 %s64, %s65
    %p67 = scmp.eq.s32.totalorder %s66, 0
    %s69 = sadd.s32 %s68, 1
    %s70 = scalar_select %p67, %s68, %s69
    %p73 = pneg %p67
    %p74 = scmp.eq.s32.totalorder %s9, 3
    %p75 = por %p73, %p74
    %p76 = scmp.ne.s32.totalorder %s68, %s71
    %p77 = scmp.eq.s32.totalorder %s9, 0
    %p78 = por %p76, %p77
    %p79 = scmp.ne.s32.totalorder %s68, %s71
    %p80 = scmp.eq.s32.totalorder %s14, 3
    %p81 = por %p79, %p80
    %p82 = scmp.ne.s32.totalorder %s71, %s72
    %p83 = scmp.eq.s32.totalorder %s14, 0
    %p84 = por %p82, %p83
    %p85 = scmp.ne.s32.totalorder %s71, %s72
    %p86 = scmp.eq.s32.totalorder %s15, 3
    %p87 = por %p85, %p86
    %p89 = scmp.ne.s32.totalorder %s72, %s88
    %p90 = scmp.eq.s32.totalorder %s15, 0
    %p91 = por %p89, %p90
    %s92 = ssub.s32 %s17, %s31
    %p93 = scmp.eq.s32.totalorder %s92, 0
    %s95 = sadd.s32 %s94, 1
    %s96 = scalar_select %p93, %s94, %s95
    %p99 = pneg %p93
    %p100 = scmp.eq.s32.totalorder %s9, 3
    %p101 = por %p99, %p100
    %p102 = scmp.ne.s32.totalorder %s94, %s97
    %p103 = scmp.eq.s32.totalorder %s9, 0
    %p104 = por %p102, %p103
    %p105 = scmp.ne.s32.totalorder %s94, %s97
    %p106 = scmp.eq.s32.totalorder %s14, 3
    %p107 = por %p105, %p106
    %p108 = scmp.ne.s32.totalorder %s97, %s98
    %p109 = scmp.eq.s32.totalorder %s14, 0
    %p110 = por %p108, %p109
    %p111 = scmp.ne.s32.totalorder %s97, %s98
    %p112 = scmp.eq.s32.totalorder %s15, 3
    %p113 = por %p111, %p112
    %p115 = scmp.ne.s32.totalorder %s98, %s114
    %p116 = scmp.eq.s32.totalorder %s15, 0
    %p117 = por %p115, %p116
    %s118 = ssub.s32 %s16, %s35
    %s119 = ssub.s32 %s17, %s31
    %s120 = sor.u32 %s118, %s119
    %p121 = scmp.eq.s32.totalorder %s120, 0
    %s123 = sadd.s32 %s122, 1
    %s124 = scalar_select %p121, %s122, %s123
    %p127 = pneg %p121
    %p128 = scmp.eq.s32.totalorder %s9, 3
    %p129 = por %p127, %p128
    %p130 = scmp.ne.s32.totalorder %s122, %s125
    %p131 = scmp.eq.s32.totalorder %s9, 0
    %p132 = por %p130, %p131
    %p133 = scmp.ne.s32.totalorder %s122, %s125
    %p134 = scmp.eq.s32.totalorder %s14, 3
    %p135 = por %p133, %p134
    %p136 = scmp.ne.s32.totalorder %s125, %s126
    %p137 = scmp.eq.s32.totalorder %s14, 0
    %p138 = por %p136, %p137
    %p139 = scmp.ne.s32.totalorder %s125, %s126
    %p140 = scmp.eq.s32.totalorder %s15, 3
    %p141 = por %p139, %p140
    %p143 = scmp.ne.s32.totalorder %s126, %s142
    %p144 = scmp.eq.s32.totalorder %s15, 0
    %p145 = por %p143, %p144
    %p146 = scmp.le.s32.totalorder 1, %s9
    %p147 = scmp.lt.s32.totalorder %s9, 5
    %p148 = pnand %p146, %p147
    %p149 = pneg %p148
    // Predicated region
    $region9: #{_jit_stem.2} parent=5 // pred_check
      _
    $region10: #{_jit_stem.2} parent=5 // pred_check_branch
      %151 = sbr.rel (%p148) target = $region12
    $region11: #{_jit_stem.2} parent=5 // pred_region
      %s152 = ssub.s32 %s9, 1
      // Predicated region
      $region13: #{_jit_stem.2} parent=11 // pred_check
        %p153 = pneg %p84
      $region14: #{_jit_stem.2} parent=11 // pred_check_branch
        %155 = sbr.rel (%p153) target = $region16
      $region15: #{_jit_stem.2} parent=11 // pred_region
        %s156 = smul.u32 32, %s21
        %p157 = scmp.lt.s32.totalorder %s156, 31
        %s158 = scalar_select %p157, %s156, 31
        %p159 = scmp.lt.s32.totalorder %s20, 0
        %s160 = scalar_select %p159, %s20, 0
        %s161 = sadd.s32 %s160, %s158
        %s162 = smul.addr %s161, 4
        %s163 = scalar_lea.vmem %s1, %s162
        %s164 = smul.u32 32, %s21
      $region16: #{_jit_stem.2} parent=11 // pred_fallthru
        _
      // Predicated region
      $region17: #{_jit_stem.2} parent=11 // pred_check
        %p165 = pneg %p110
      $region18: #{_jit_stem.2} parent=11 // pred_check_branch
        %167 = sbr.rel (%p165) target = $region20
      $region19: #{_jit_stem.2} parent=11 // pred_region
        %p168 = scmp.lt.s32.totalorder %s20, 0
        %s169 = scalar_select %p168, %s20, 0
        %s170 = scalar_lea.vmem %s2, %s169
      $region20: #{_jit_stem.2} parent=11 // pred_fallthru
        _
    $region12: #{_jit_stem.2} parent=5 // pred_fallthru
      _
    %p171 = scmp.lt.s32.totalorder %s9, 4
    // Predicated region
    $region21: #{_jit_stem.2} parent=5 // pred_check
      %p172 = pneg %p171
    $region22: #{_jit_stem.2} parent=5 // pred_check_branch
      %174 = sbr.rel (%p172) target = $region24
    $region23: #{_jit_stem.2} parent=5 // pred_region
      // Predicated region
      $region25: #{_jit_stem.2} parent=23 // pred_check
        %p175 = pneg %p50
      $region26: #{_jit_stem.2} parent=23 // pred_check_branch
        %177 = sbr.rel (%p175) target = $region28
      $region27: #{_jit_stem.2} parent=23 // pred_region
        %s178 = smul.u32 64, %s16
        %s179 = smul.u32 2, %s18
        %p180 = scmp.lt.s32.totalorder %s178, 255
        %s181 = scalar_select %p180, %s178, 255
        %p182 = scmp.lt.s32.totalorder %s179, 1
        %s183 = scalar_select %p182, %s179, 1
        %s184 = smul.addr %s181, 2
        %s185 = sadd.s32 %s183, %s184
        %s186 = smul.addr %s185, 4
        %s187 = scalar_lea.vmem %s0, %s186
        %s188 = smul.u32 64, %s16
        %s189 = smul.u32 2, %s18
      $region28: #{_jit_stem.2} parent=23 // pred_fallthru
        _
    $region24: #{_jit_stem.2} parent=5 // pred_fallthru
      _
    %p190 = scmp.le.s32.totalorder 1, %s9
    %p191 = scmp.lt.s32.totalorder %s9, 5
    %p192 = pnand %p190, %p191
    %p193 = pneg %p192
    // Predicated region
    $region29: #{_jit_stem.2} parent=5 // pred_check
      _
    $region30: #{_jit_stem.2} parent=5 // pred_check_branch
      %195 = sbr.rel (%p192) target = $region32
    $region31: #{_jit_stem.2} parent=5 // pred_region
      %s196 = ssub.s32 %s9, 1
      %s197 = smul.u32 64, %s19
      %s198 = smul.u32 2, %s21
      %p199 = scmp.lt.s32.totalorder %s197, 255
      %s200 = scalar_select %p199, %s197, 255
      %p201 = scmp.lt.s32.totalorder %s198, 1
      %s202 = scalar_select %p201, %s198, 1
      %s203 = smul.addr %s200, 2
      %s204 = sadd.s32 %s202, %s203
      %s205 = smul.addr %s204, 4
      %s206 = scalar_lea.vmem %s0, %s205
      %p207 = pneg %p56
      %p208 = pneg %p53
      %s209 = smul.u32 32, %s21
      %p210 = scmp.lt.s32.totalorder %s209, 31
      %s211 = scalar_select %p210, %s209, 31
      %p212 = scmp.lt.s32.totalorder %s20, 0
      %s213 = scalar_select %p212, %s20, 0
      %s214 = sadd.s32 %s213, %s211
      %s215 = smul.addr %s214, 4
      %s216 = scalar_lea.vmem %s1, %s215
      %p217 = pneg %p84
      %p218 = pneg %p81
      %p219 = scmp.lt.s32.totalorder %s20, 0
      %s220 = scalar_select %p219, %s20, 0
      %s221 = scalar_lea.vmem %s2, %s220
      %p222 = pneg %p110
      %p223 = pneg %p107
      %p224 = pneg %p138
      %p225 = pneg %p135
      %s226 = smul.u32 64, %s19
      %p227 = scmp.lt.s32.totalorder %s226, 255
      %s228 = scalar_select %p227, %s226, 255
      %p229 = scmp.lt.s32.totalorder %s20, 0
      %s230 = scalar_select %p229, %s20, 0
      %s231 = sadd.s32 %s230, %s228
      %s232 = smul.addr %s231, 4
      %s233 = scalar_lea.vmem %s3, %s232
      %s234 = smul.u32 64, %s19
      %s235 = smul.u32 2, %s21
      %p236 = scmp.lt.s32.totalorder %s234, 255
      %s237 = scalar_select %p236, %s234, 255
      %p238 = scmp.lt.s32.totalorder %s235, 1
      %s239 = scalar_select %p238, %s235, 1
      %s240 = smul.addr %s237, 2
      %s241 = sadd.s32 %s239, %s240
      %s242 = smul.addr %s241, 4
      %s243 = scalar_lea.vmem %s0, %s242
      %s244 = smul.u32 64, %s19
      %s245 = smul.u32 2, %s21
      %s246 = smul.u32 32, %s21
      %p247 = scmp.lt.s32.totalorder %s246, 31
      %s248 = scalar_select %p247, %s246, 31
      %p249 = scmp.lt.s32.totalorder %s20, 0
      %s250 = scalar_select %p249, %s20, 0
      %s251 = sadd.s32 %s250, %s248
      %s252 = smul.addr %s251, 4
      %s253 = scalar_lea.vmem %s1, %s252
      %s254 = smul.u32 32, %s21
      %p255 = scmp.lt.s32.totalorder %s20, 0
      %s256 = scalar_select %p255, %s20, 0
      %s257 = scalar_lea.vmem %s2, %s256
      %s258 = smul.u32 64, %s19
      %p259 = scmp.lt.s32.totalorder %s258, 255
      %s260 = scalar_select %p259, %s258, 255
      %p261 = scmp.lt.s32.totalorder %s20, 0
      %s262 = scalar_select %p261, %s20, 0
      %s263 = sadd.s32 %s262, %s260
      %s264 = smul.addr %s263, 4
      %s265 = scalar_lea.vmem %s3, %s264
      %s266 = smul.u32 64, %s19
      %p267 = scmp.eq.s32.totalorder %s21, 0
      // Predicated region
      $region33: #{_jit_stem.2} parent=31 // pred_check
        %p268 = pneg %p267
      $region34: #{_jit_stem.2} parent=31 // pred_check_branch
        %270 = sbr.rel (%p268) target = $region36
      $region35: #{_jit_stem.2} parent=31 // pred_region
        %271 = vst [vmem:[#allocation2] sm:$0xff] 0.0
        %272 = vst [vmem:[#allocation2 + $0x8] sm:$0xff] 0.0
        %273 = vst [vmem:[#allocation2 + $0x10] sm:$0xff] 0.0
        %274 = vst [vmem:[#allocation2 + $0x18] sm:$0xff] 0.0
        %275 = vst [vmem:[#allocation2 + $0x20] sm:$0xff] 0.0
        %276 = vst [vmem:[#allocation2 + $0x28] sm:$0xff] 0.0
        %277 = vst [vmem:[#allocation2 + $0x30] sm:$0xff] 0.0
        %278 = vst [vmem:[#allocation2 + $0x38] sm:$0xff] 0.0
        %279 = vst [vmem:[#allocation2 + $0x40] sm:$0xff] 0.0
        %280 = vst [vmem:[#allocation2 + $0x48] sm:$0xff] 0.0
        %281 = vst [vmem:[#allocation2 + $0x50] sm:$0xff] 0.0
        %282 = vst [vmem:[#allocation2 + $0x58] sm:$0xff] 0.0
        %283 = vst [vmem:[#allocation2 + $0x60] sm:$0xff] 0.0
        %284 = vst [vmem:[#allocation2 + $0x68] sm:$0xff] 0.0
        %285 = vst [vmem:[#allocation2 + $0x70] sm:$0xff] 0.0
        %286 = vst [vmem:[#allocation2 + $0x78] sm:$0xff] 0.0
        %287 = vst [vmem:[#allocation2 + $0x80] sm:$0xff] 0.0
        %288 = vst [vmem:[#allocation2 + $0x88] sm:$0xff] 0.0
        %289 = vst [vmem:[#allocation2 + $0x90] sm:$0xff] 0.0
        %290 = vst [vmem:[#allocation2 + $0x98] sm:$0xff] 0.0
        %291 = vst [vmem:[#allocation2 + $0xa0] sm:$0xff] 0.0
        %292 = vst [vmem:[#allocation2 + $0xa8] sm:$0xff] 0.0
        %293 = vst [vmem:[#allocation2 + $0xb0] sm:$0xff] 0.0
        %294 = vst [vmem:[#allocation2 + $0xb8] sm:$0xff] 0.0
        %295 = vst [vmem:[#allocation2 + $0xc0] sm:$0xff] 0.0
        %296 = vst [vmem:[#allocation2 + $0xc8] sm:$0xff] 0.0
        %297 = vst [vmem:[#allocation2 + $0xd0] sm:$0xff] 0.0
        %298 = vst [vmem:[#allocation2 + $0xd8] sm:$0xff] 0.0
        %299 = vst [vmem:[#allocation2 + $0xe0] sm:$0xff] 0.0
        %300 = vst [vmem:[#allocation2 + $0xe8] sm:$0xff] 0.0
        %301 = vst [vmem:[#allocation2 + $0xf0] sm:$0xff] 0.0
        %302 = vst [vmem:[#allocation2 + $0xf8] sm:$0xff] 0.0
        %303 = vst [vmem:[#allocation2 + $0x100] sm:$0xff] 0.0
        %304 = vst [vmem:[#allocation2 + $0x108] sm:$0xff] 0.0
        %305 = vst [vmem:[#allocation2 + $0x110] sm:$0xff] 0.0
        %306 = vst [vmem:[#allocation2 + $0x118] sm:$0xff] 0.0
        %307 = vst [vmem:[#allocation2 + $0x120] sm:$0xff] 0.0
        %308 = vst [vmem:[#allocation2 + $0x128] sm:$0xff] 0.0
        %309 = vst [vmem:[#allocation2 + $0x130] sm:$0xff] 0.0
        %310 = vst [vmem:[#allocation2 + $0x138] sm:$0xff] 0.0
        %311 = vst [vmem:[#allocation2 + $0x140] sm:$0xff] 0.0
        %312 = vst [vmem:[#allocation2 + $0x148] sm:$0xff] 0.0
        %313 = vst [vmem:[#allocation2 + $0x150] sm:$0xff] 0.0
        %314 = vst [vmem:[#allocation2 + $0x158] sm:$0xff] 0.0
        %315 = vst [vmem:[#allocation2 + $0x160] sm:$0xff] 0.0
        %316 = vst [vmem:[#allocation2 + $0x168] sm:$0xff] 0.0
        %317 = vst [vmem:[#allocation2 + $0x170] sm:$0xff] 0.0
        %318 = vst [vmem:[#allocation2 + $0x178] sm:$0xff] 0.0
        %319 = vst [vmem:[#allocation2 + $0x180] sm:$0xff] 0.0
        %320 = vst [vmem:[#allocation2 + $0x188] sm:$0xff] 0.0
        %321 = vst [vmem:[#allocation2 + $0x190] sm:$0xff] 0.0
        %322 = vst [vmem:[#allocation2 + $0x198] sm:$0xff] 0.0
        %323 = vst [vmem:[#allocation2 + $0x1a0] sm:$0xff] 0.0
        %324 = vst [vmem:[#allocation2 + $0x1a8] sm:$0xff] 0.0
        %325 = vst [vmem:[#allocation2 + $0x1b0] sm:$0xff] 0.0
        %326 = vst [vmem:[#allocation2 + $0x1b8] sm:$0xff] 0.0
        %327 = vst [vmem:[#allocation2 + $0x1c0] sm:$0xff] 0.0
        %328 = vst [vmem:[#allocation2 + $0x1c8] sm:$0xff] 0.0
        %329 = vst [vmem:[#allocation2 + $0x1d0] sm:$0xff] 0.0
        %330 = vst [vmem:[#allocation2 + $0x1d8] sm:$0xff] 0.0
        %331 = vst [vmem:[#allocation2 + $0x1e0] sm:$0xff] 0.0
        %332 = vst [vmem:[#allocation2 + $0x1e8] sm:$0xff] 0.0
        %333 = vst [vmem:[#allocation2 + $0x1f0] sm:$0xff] 0.0
        %334 = vst [vmem:[#allocation2 + $0x1f8] sm:$0xff] 0.0
      $region36: #{_jit_stem.2} parent=31 // pred_fallthru
        _
      %v335 = vld [vmem:[#allocation2] sm:$0xff]
      %v336 = vld [vmem:[#allocation2 + $0x8] sm:$0xff]
      %v337 = vld [vmem:[#allocation2 + $0x10] sm:$0xff]
      %v338 = vld [vmem:[#allocation2 + $0x18] sm:$0xff]
      %v339 = vld [vmem:[#allocation2 + $0x20] sm:$0xff]
      %v340 = vld [vmem:[#allocation2 + $0x28] sm:$0xff]
      %v341 = vld [vmem:[#allocation2 + $0x30] sm:$0xff]
      %v342 = vld [vmem:[#allocation2 + $0x38] sm:$0xff]
      %v343 = vld [vmem:[#allocation2 + $0x40] sm:$0xff]
      %v344 = vld [vmem:[#allocation2 + $0x48] sm:$0xff]
      %v345 = vld [vmem:[#allocation2 + $0x50] sm:$0xff]
      %v346 = vld [vmem:[#allocation2 + $0x58] sm:$0xff]
      %v347 = vld [vmem:[#allocation2 + $0x60] sm:$0xff]
      %v348 = vld [vmem:[#allocation2 + $0x68] sm:$0xff]
      %v349 = vld [vmem:[#allocation2 + $0x70] sm:$0xff]
      %v350 = vld [vmem:[#allocation2 + $0x78] sm:$0xff]
      %v351 = vld [vmem:[#allocation2 + $0x80] sm:$0xff]
      %v352 = vld [vmem:[#allocation2 + $0x88] sm:$0xff]
      %v353 = vld [vmem:[#allocation2 + $0x90] sm:$0xff]
      %v354 = vld [vmem:[#allocation2 + $0x98] sm:$0xff]
      %v355 = vld [vmem:[#allocation2 + $0xa0] sm:$0xff]
      %v356 = vld [vmem:[#allocation2 + $0xa8] sm:$0xff]
      %v357 = vld [vmem:[#allocation2 + $0xb0] sm:$0xff]
      %v358 = vld [vmem:[#allocation2 + $0xb8] sm:$0xff]
      %v359 = vld [vmem:[#allocation2 + $0xc0] sm:$0xff]
      %v360 = vld [vmem:[#allocation2 + $0xc8] sm:$0xff]
      %v361 = vld [vmem:[#allocation2 + $0xd0] sm:$0xff]
      %v362 = vld [vmem:[#allocation2 + $0xd8] sm:$0xff]
      %v363 = vld [vmem:[#allocation2 + $0xe0] sm:$0xff]
      %v364 = vld [vmem:[#allocation2 + $0xe8] sm:$0xff]
      %v365 = vld [vmem:[#allocation2 + $0xf0] sm:$0xff]
      %v366 = vld [vmem:[#allocation2 + $0xf8] sm:$0xff]
      %v367 = vld [vmem:[#allocation2 + $0x100] sm:$0xff]
      %v368 = vld [vmem:[#allocation2 + $0x108] sm:$0xff]
      %v369 = vld [vmem:[#allocation2 + $0x110] sm:$0xff]
      %v370 = vld [vmem:[#allocation2 + $0x118] sm:$0xff]
      %v371 = vld [vmem:[#allocation2 + $0x120] sm:$0xff]
      %v372 = vld [vmem:[#allocation2 + $0x128] sm:$0xff]
      %v373 = vld [vmem:[#allocation2 + $0x130] sm:$0xff]
      %v374 = vld [vmem:[#allocation2 + $0x138] sm:$0xff]
      %v375 = vld [vmem:[#allocation2 + $0x140] sm:$0xff]
      %v376 = vld [vmem:[#allocation2 + $0x148] sm:$0xff]
      %v377 = vld [vmem:[#allocation2 + $0x150] sm:$0xff]
      %v378 = vld [vmem:[#allocation2 + $0x158] sm:$0xff]
      %v379 = vld [vmem:[#allocation2 + $0x160] sm:$0xff]
      %v380 = vld [vmem:[#allocation2 + $0x168] sm:$0xff]
      %v381 = vld [vmem:[#allocation2 + $0x170] sm:$0xff]
      %v382 = vld [vmem:[#allocation2 + $0x178] sm:$0xff]
      %v383 = vld [vmem:[#allocation2 + $0x180] sm:$0xff]
      %v384 = vld [vmem:[#allocation2 + $0x188] sm:$0xff]
      %v385 = vld [vmem:[#allocation2 + $0x190] sm:$0xff]
      %v386 = vld [vmem:[#allocation2 + $0x198] sm:$0xff]
      %v387 = vld [vmem:[#allocation2 + $0x1a0] sm:$0xff]
      %v388 = vld [vmem:[#allocation2 + $0x1a8] sm:$0xff]
      %v389 = vld [vmem:[#allocation2 + $0x1b0] sm:$0xff]
      %v390 = vld [vmem:[#allocation2 + $0x1b8] sm:$0xff]
      %v391 = vld [vmem:[#allocation2 + $0x1c0] sm:$0xff]
      %v392 = vld [vmem:[#allocation2 + $0x1c8] sm:$0xff]
      %v393 = vld [vmem:[#allocation2 + $0x1d0] sm:$0xff]
      %v394 = vld [vmem:[#allocation2 + $0x1d8] sm:$0xff]
      %v395 = vld [vmem:[#allocation2 + $0x1e0] sm:$0xff]
      %v396 = vld [vmem:[#allocation2 + $0x1e8] sm:$0xff]
      %v397 = vld [vmem:[#allocation2 + $0x1f0] sm:$0xff]
      %v398 = vld [vmem:[#allocation2 + $0x1f8] sm:$0xff]
      %v399 = vld [vmem:[%s243] sm:$0xff]
      %v400 = vld [vmem:[%s243 + $0x8] sm:$0xff]
      %v401 = vld [vmem:[%s243 + $0x10] sm:$0xff]
      %v402 = vld [vmem:[%s243 + $0x18] sm:$0xff]
      %v403 = vld [vmem:[%s243 + $0x20] sm:$0xff]
      %v404 = vld [vmem:[%s243 + $0x28] sm:$0xff]
      %v405 = vld [vmem:[%s243 + $0x30] sm:$0xff]
      %v406 = vld [vmem:[%s243 + $0x38] sm:$0xff]
      %v407 = vld [vmem:[%s243 + $0x40] sm:$0xff]
      %v408 = vld [vmem:[%s243 + $0x48] sm:$0xff]
      %v409 = vld [vmem:[%s243 + $0x50] sm:$0xff]
      %v410 = vld [vmem:[%s243 + $0x58] sm:$0xff]
      %v411 = vld [vmem:[%s243 + $0x60] sm:$0xff]
      %v412 = vld [vmem:[%s243 + $0x68] sm:$0xff]
      %v413 = vld [vmem:[%s243 + $0x70] sm:$0xff]
      %v414 = vld [vmem:[%s243 + $0x78] sm:$0xff]
      %v415 = vld [vmem:[%s243 + $0x80] sm:$0xff]
      %v416 = vld [vmem:[%s243 + $0x88] sm:$0xff]
      %v417 = vld [vmem:[%s243 + $0x90] sm:$0xff]
      %v418 = vld [vmem:[%s243 + $0x98] sm:$0xff]
      %v419 = vld [vmem:[%s243 + $0xa0] sm:$0xff]
      %v420 = vld [vmem:[%s243 + $0xa8] sm:$0xff]
      %v421 = vld [vmem:[%s243 + $0xb0] sm:$0xff]
      %v422 = vld [vmem:[%s243 + $0xb8] sm:$0xff]
      %v423 = vld [vmem:[%s243 + $0xc0] sm:$0xff]
      %v424 = vld [vmem:[%s243 + $0xc8] sm:$0xff]
      %v425 = vld [vmem:[%s243 + $0xd0] sm:$0xff]
      %v426 = vld [vmem:[%s243 + $0xd8] sm:$0xff]
      %v427 = vld [vmem:[%s243 + $0xe0] sm:$0xff]
      %v428 = vld [vmem:[%s243 + $0xe8] sm:$0xff]
      %v429 = vld [vmem:[%s243 + $0xf0] sm:$0xff]
      %v430 = vld [vmem:[%s243 + $0xf8] sm:$0xff]
      %v431 = vld [vmem:[%s243 + $0x100] sm:$0xff]
      %v432 = vld [vmem:[%s243 + $0x108] sm:$0xff]
      %v433 = vld [vmem:[%s243 + $0x110] sm:$0xff]
      %v434 = vld [vmem:[%s243 + $0x118] sm:$0xff]
      %v435 = vld [vmem:[%s243 + $0x120] sm:$0xff]
      %v436 = vld [vmem:[%s243 + $0x128] sm:$0xff]
      %v437 = vld [vmem:[%s243 + $0x130] sm:$0xff]
      %v438 = vld [vmem:[%s243 + $0x138] sm:$0xff]
      %v439 = vld [vmem:[%s243 + $0x140] sm:$0xff]
      %v440 = vld [vmem:[%s243 + $0x148] sm:$0xff]
      %v441 = vld [vmem:[%s243 + $0x150] sm:$0xff]
      %v442 = vld [vmem:[%s243 + $0x158] sm:$0xff]
      %v443 = vld [vmem:[%s243 + $0x160] sm:$0xff]
      %v444 = vld [vmem:[%s243 + $0x168] sm:$0xff]
      %v445 = vld [vmem:[%s243 + $0x170] sm:$0xff]
      %v446 = vld [vmem:[%s243 + $0x178] sm:$0xff]
      %v447 = vld [vmem:[%s243 + $0x180] sm:$0xff]
      %v448 = vld [vmem:[%s243 + $0x188] sm:$0xff]
      %v449 = vld [vmem:[%s243 + $0x190] sm:$0xff]
      %v450 = vld [vmem:[%s243 + $0x198] sm:$0xff]
      %v451 = vld [vmem:[%s243 + $0x1a0] sm:$0xff]
      %v452 = vld [vmem:[%s243 + $0x1a8] sm:$0xff]
      %v453 = vld [vmem:[%s243 + $0x1b0] sm:$0xff]
      %v454 = vld [vmem:[%s243 + $0x1b8] sm:$0xff]
      %v455 = vld [vmem:[%s243 + $0x1c0] sm:$0xff]
      %v456 = vld [vmem:[%s243 + $0x1c8] sm:$0xff]
      %v457 = vld [vmem:[%s243 + $0x1d0] sm:$0xff]
      %v458 = vld [vmem:[%s243 + $0x1d8] sm:$0xff]
      %v459 = vld [vmem:[%s243 + $0x1e0] sm:$0xff]
      %v460 = vld [vmem:[%s243 + $0x1e8] sm:$0xff]
      %v461 = vld [vmem:[%s243 + $0x1f0] sm:$0xff]
      %v462 = vld [vmem:[%s243 + $0x1f8] sm:$0xff]
      %v463 = vld [vmem:[%s253] sm:$0xf]
      %v464 = vld [vmem:[%s253 + $0x4] sm:$0xf]
      %v465 = vld [vmem:[%s253 + $0x8] sm:$0xf]
      %v466 = vld [vmem:[%s253 + $0xc] sm:$0xf]
      %v467 = vld [vmem:[%s253 + $0x10] sm:$0xf]
      %v468 = vld [vmem:[%s253 + $0x14] sm:$0xf]
      %v469 = vld [vmem:[%s253 + $0x18] sm:$0xf]
      %v470 = vld [vmem:[%s253 + $0x1c] sm:$0xf]
      %v471 = vld [vmem:[%s253 + $0x20] sm:$0xf]
      %v472 = vld [vmem:[%s253 + $0x24] sm:$0xf]
      %v473 = vld [vmem:[%s253 + $0x28] sm:$0xf]
      %v474 = vld [vmem:[%s253 + $0x2c] sm:$0xf]
      %v475 = vld [vmem:[%s253 + $0x30] sm:$0xf]
      %v476 = vld [vmem:[%s253 + $0x34] sm:$0xf]
      %v477 = vld [vmem:[%s253 + $0x38] sm:$0xf]
      %v478 = vld [vmem:[%s253 + $0x3c] sm:$0xf]
      %v479 = vld [vmem:[%s253 + $0x40] sm:$0xf]
      %v480 = vld [vmem:[%s253 + $0x44] sm:$0xf]
      %v481 = vld [vmem:[%s253 + $0x48] sm:$0xf]
      %v482 = vld [vmem:[%s253 + $0x4c] sm:$0xf]
      %v483 = vld [vmem:[%s253 + $0x50] sm:$0xf]
      %v484 = vld [vmem:[%s253 + $0x54] sm:$0xf]
      %v485 = vld [vmem:[%s253 + $0x58] sm:$0xf]
      %v486 = vld [vmem:[%s253 + $0x5c] sm:$0xf]
      %v487 = vld [vmem:[%s253 + $0x60] sm:$0xf]
      %v488 = vld [vmem:[%s253 + $0x64] sm:$0xf]
      %v489 = vld [vmem:[%s253 + $0x68] sm:$0xf]
      %v490 = vld [vmem:[%s253 + $0x6c] sm:$0xf]
      %v491 = vld [vmem:[%s253 + $0x70] sm:$0xf]
      %v492 = vld [vmem:[%s253 + $0x74] sm:$0xf]
      %v493 = vld [vmem:[%s253 + $0x78] sm:$0xf]
      %v494 = vld [vmem:[%s253 + $0x7c] sm:$0xf]
      %v559 = vunpack.c.l.b16 %v399
      %v560 = vunpack.c.h.b16 %v399
      %v561 = vunpack.c.l.b16 %v400
      %v562 = vunpack.c.h.b16 %v400
      %v563 = vunpack.c.l.b16 %v401
      %v564 = vunpack.c.h.b16 %v401
      %v565 = vunpack.c.l.b16 %v402
      %v566 = vunpack.c.h.b16 %v402
      %v567 = vunpack.c.l.b16 %v403
      %v568 = vunpack.c.h.b16 %v403
      %v569 = vunpack.c.l.b16 %v404
      %v570 = vunpack.c.h.b16 %v404
      %v571 = vunpack.c.l.b16 %v405
      %v572 = vunpack.c.h.b16 %v405
      %v573 = vunpack.c.l.b16 %v406
      %v574 = vunpack.c.h.b16 %v406
      %v575 = vunpack.c.l.b16 %v407
      %v576 = vunpack.c.h.b16 %v407
      %v577 = vunpack.c.l.b16 %v408
      %v578 = vunpack.c.h.b16 %v408
      %v579 = vunpack.c.l.b16 %v409
      %v580 = vunpack.c.h.b16 %v409
      %v581 = vunpack.c.l.b16 %v410
      %v582 = vunpack.c.h.b16 %v410
      %v583 = vunpack.c.l.b16 %v411
      %v584 = vunpack.c.h.b16 %v411
      %v585 = vunpack.c.l.b16 %v412
      %v586 = vunpack.c.h.b16 %v412
      %v587 = vunpack.c.l.b16 %v413
      %v588 = vunpack.c.h.b16 %v413
      %v589 = vunpack.c.l.b16 %v414
      %v590 = vunpack.c.h.b16 %v414
      %v591 = vunpack.c.l.b16 %v415
      %v592 = vunpack.c.h.b16 %v415
      %v593 = vunpack.c.l.b16 %v416
      %v594 = vunpack.c.h.b16 %v416
      %v595 = vunpack.c.l.b16 %v417
      %v596 = vunpack.c.h.b16 %v417
      %v597 = vunpack.c.l.b16 %v418
      %v598 = vunpack.c.h.b16 %v418
      %v599 = vunpack.c.l.b16 %v419
      %v600 = vunpack.c.h.b16 %v419
      %v601 = vunpack.c.l.b16 %v420
      %v602 = vunpack.c.h.b16 %v420
      %v603 = vunpack.c.l.b16 %v421
      %v604 = vunpack.c.h.b16 %v421
      %v605 = vunpack.c.l.b16 %v422
      %v606 = vunpack.c.h.b16 %v422
      %v607 = vunpack.c.l.b16 %v423
      %v608 = vunpack.c.h.b16 %v423
      %v609 = vunpack.c.l.b16 %v424
      %v610 = vunpack.c.h.b16 %v424
      %v611 = vunpack.c.l.b16 %v425
      %v612 = vunpack.c.h.b16 %v425
      %v613 = vunpack.c.l.b16 %v426
      %v614 = vunpack.c.h.b16 %v426
      %v615 = vunpack.c.l.b16 %v427
      %v616 = vunpack.c.h.b16 %v427
      %v617 = vunpack.c.l.b16 %v428
      %v618 = vunpack.c.h.b16 %v428
      %v619 = vunpack.c.l.b16 %v429
      %v620 = vunpack.c.h.b16 %v429
      %v621 = vunpack.c.l.b16 %v430
      %v622 = vunpack.c.h.b16 %v430
      %v623 = vunpack.c.l.b16 %v431
      %v624 = vunpack.c.h.b16 %v431
      %v625 = vunpack.c.l.b16 %v432
      %v626 = vunpack.c.h.b16 %v432
      %v627 = vunpack.c.l.b16 %v433
      %v628 = vunpack.c.h.b16 %v433
      %v629 = vunpack.c.l.b16 %v434
      %v630 = vunpack.c.h.b16 %v434
      %v631 = vunpack.c.l.b16 %v435
      %v632 = vunpack.c.h.b16 %v435
      %v633 = vunpack.c.l.b16 %v436
      %v634 = vunpack.c.h.b16 %v436
      %v635 = vunpack.c.l.b16 %v437
      %v636 = vunpack.c.h.b16 %v437
      %v637 = vunpack.c.l.b16 %v438
      %v638 = vunpack.c.h.b16 %v438
      %v639 = vunpack.c.l.b16 %v439
      %v640 = vunpack.c.h.b16 %v439
      %v641 = vunpack.c.l.b16 %v440
      %v642 = vunpack.c.h.b16 %v440
      %v643 = vunpack.c.l.b16 %v441
      %v644 = vunpack.c.h.b16 %v441
      %v645 = vunpack.c.l.b16 %v442
      %v646 = vunpack.c.h.b16 %v442
      %v647 = vunpack.c.l.b16 %v443
      %v648 = vunpack.c.h.b16 %v443
      %v649 = vunpack.c.l.b16 %v444
      %v650 = vunpack.c.h.b16 %v444
      %v651 = vunpack.c.l.b16 %v445
      %v652 = vunpack.c.h.b16 %v445
      %v653 = vunpack.c.l.b16 %v446
      %v654 = vunpack.c.h.b16 %v446
      %v655 = vunpack.c.l.b16 %v447
      %v656 = vunpack.c.h.b16 %v447
      %v657 = vunpack.c.l.b16 %v448
      %v658 = vunpack.c.h.b16 %v448
      %v659 = vunpack.c.l.b16 %v449
      %v660 = vunpack.c.h.b16 %v449
      %v661 = vunpack.c.l.b16 %v450
      %v662 = vunpack.c.h.b16 %v450
      %v663 = vunpack.c.l.b16 %v451
      %v664 = vunpack.c.h.b16 %v451
      %v665 = vunpack.c.l.b16 %v452
      %v666 = vunpack.c.h.b16 %v452
      %v667 = vunpack.c.l.b16 %v453
      %v668 = vunpack.c.h.b16 %v453
      %v669 = vunpack.c.l.b16 %v454
      %v670 = vunpack.c.h.b16 %v454
      %v671 = vunpack.c.l.b16 %v455
      %v672 = vunpack.c.h.b16 %v455
      %v673 = vunpack.c.l.b16 %v456
      %v674 = vunpack.c.h.b16 %v456
      %v675 = vunpack.c.l.b16 %v457
      %v676 = vunpack.c.h.b16 %v457
      %v677 = vunpack.c.l.b16 %v458
      %v678 = vunpack.c.h.b16 %v458
      %v679 = vunpack.c.l.b16 %v459
      %v680 = vunpack.c.h.b16 %v459
      %v681 = vunpack.c.l.b16 %v460
      %v682 = vunpack.c.h.b16 %v460
      %v683 = vunpack.c.l.b16 %v461
      %v684 = vunpack.c.h.b16 %v461
      %v685 = vunpack.c.l.b16 %v462
      %v686 = vunpack.c.h.b16 %v462
      %v687 = vpack.c.b16 %v561, %v559
      %v688 = vpack.c.b16 %v562, %v560
      %v689 = vpack.c.b16 %v565, %v563
      %v690 = vpack.c.b16 %v566, %v564
      %v691 = vpack.c.b16 %v569, %v567
      %v692 = vpack.c.b16 %v570, %v568
      %v693 = vpack.c.b16 %v573, %v571
      %v694 = vpack.c.b16 %v574, %v572
      %v695 = vpack.c.b16 %v577, %v575
      %v696 = vpack.c.b16 %v578, %v576
      %v697 = vpack.c.b16 %v581, %v579
      %v698 = vpack.c.b16 %v582, %v580
      %v699 = vpack.c.b16 %v585, %v583
      %v700 = vpack.c.b16 %v586, %v584
      %v701 = vpack.c.b16 %v589, %v587
      %v702 = vpack.c.b16 %v590, %v588
      %v703 = vpack.c.b16 %v593, %v591
      %v704 = vpack.c.b16 %v594, %v592
      %v705 = vpack.c.b16 %v597, %v595
      %v706 = vpack.c.b16 %v598, %v596
      %v707 = vpack.c.b16 %v601, %v599
      %v708 = vpack.c.b16 %v602, %v600
      %v709 = vpack.c.b16 %v605, %v603
      %v710 = vpack.c.b16 %v606, %v604
      %v711 = vpack.c.b16 %v609, %v607
      %v712 = vpack.c.b16 %v610, %v608
      %v713 = vpack.c.b16 %v613, %v611
      %v714 = vpack.c.b16 %v614, %v612
      %v715 = vpack.c.b16 %v617, %v615
      %v716 = vpack.c.b16 %v618, %v616
      %v717 = vpack.c.b16 %v621, %v619
      %v718 = vpack.c.b16 %v622, %v620
      %v719 = vpack.c.b16 %v625, %v623
      %v720 = vpack.c.b16 %v626, %v624
      %v721 = vpack.c.b16 %v629, %v627
      %v722 = vpack.c.b16 %v630, %v628
      %v723 = vpack.c.b16 %v633, %v631
      %v724 = vpack.c.b16 %v634, %v632
      %v725 = vpack.c.b16 %v637, %v635
      %v726 = vpack.c.b16 %v638, %v636
      %v727 = vpack.c.b16 %v641, %v639
      %v728 = vpack.c.b16 %v642, %v640
      %v729 = vpack.c.b16 %v645, %v643
      %v730 = vpack.c.b16 %v646, %v644
      %v731 = vpack.c.b16 %v649, %v647
      %v732 = vpack.c.b16 %v650, %v648
      %v733 = vpack.c.b16 %v653, %v651
      %v734 = vpack.c.b16 %v654, %v652
      %v735 = vpack.c.b16 %v657, %v655
      %v736 = vpack.c.b16 %v658, %v656
      %v737 = vpack.c.b16 %v661, %v659
      %v738 = vpack.c.b16 %v662, %v660
      %v739 = vpack.c.b16 %v665, %v663
      %v740 = vpack.c.b16 %v666, %v664
      %v741 = vpack.c.b16 %v669, %v667
      %v742 = vpack.c.b16 %v670, %v668
      %v743 = vpack.c.b16 %v673, %v671
      %v744 = vpack.c.b16 %v674, %v672
      %v745 = vpack.c.b16 %v677, %v675
      %v746 = vpack.c.b16 %v678, %v676
      %v747 = vpack.c.b16 %v681, %v679
      %v748 = vpack.c.b16 %v682, %v680
      %v749 = vpack.c.b16 %v685, %v683
      %v750 = vpack.c.b16 %v686, %v684
      %v847 = vunpack.c.l.b16 %v463
      %v848 = vunpack.c.l.b16 %v464
      %v849 = vunpack.c.l.b16 %v465
      %v850 = vunpack.c.l.b16 %v466
      %v851 = vunpack.c.l.b16 %v467
      %v852 = vunpack.c.l.b16 %v468
      %v853 = vunpack.c.l.b16 %v469
      %v854 = vunpack.c.l.b16 %v470
      %v855 = vunpack.c.l.b16 %v471
      %v856 = vunpack.c.l.b16 %v472
      %v857 = vunpack.c.l.b16 %v473
      %v858 = vunpack.c.l.b16 %v474
      %v859 = vunpack.c.l.b16 %v475
      %v860 = vunpack.c.l.b16 %v476
      %v861 = vunpack.c.l.b16 %v477
      %v862 = vunpack.c.l.b16 %v478
      %v863 = vunpack.c.l.b16 %v479
      %v864 = vunpack.c.l.b16 %v480
      %v865 = vunpack.c.l.b16 %v481
      %v866 = vunpack.c.l.b16 %v482
      %v867 = vunpack.c.l.b16 %v483
      %v868 = vunpack.c.l.b16 %v484
      %v869 = vunpack.c.l.b16 %v485
      %v870 = vunpack.c.l.b16 %v486
      %v871 = vunpack.c.l.b16 %v487
      %v872 = vunpack.c.l.b16 %v488
      %v873 = vunpack.c.l.b16 %v489
      %v874 = vunpack.c.l.b16 %v490
      %v875 = vunpack.c.l.b16 %v491
      %v876 = vunpack.c.l.b16 %v492
      %v877 = vunpack.c.l.b16 %v493
      %v878 = vunpack.c.l.b16 %v494
      %v879 = vpack.c.b16 %v848, %v847
      %v880 = vpack.c.b16 %v850, %v849
      %v881 = vpack.c.b16 %v852, %v851
      %v882 = vpack.c.b16 %v854, %v853
      %v883 = vpack.c.b16 %v856, %v855
      %v884 = vpack.c.b16 %v858, %v857
      %v885 = vpack.c.b16 %v860, %v859
      %v886 = vpack.c.b16 %v862, %v861
      %v887 = vpack.c.b16 %v864, %v863
      %v888 = vpack.c.b16 %v866, %v865
      %v889 = vpack.c.b16 %v868, %v867
      %v890 = vpack.c.b16 %v870, %v869
      %v891 = vpack.c.b16 %v872, %v871
      %v892 = vpack.c.b16 %v874, %v873
      %v893 = vpack.c.b16 %v876, %v875
      %v894 = vpack.c.b16 %v878, %v877
      %911 = vmatpush.bf16.msra.mxu0 %v886
      %912 = vmatpush.bf16.msra.mxu0 %v885
      %913 = vmatpush.bf16.msra.mxu0 %v884
      %914 = vmatpush.bf16.msra.mxu0 %v883
      %915 = vmatpush.bf16.msra.mxu0 %v882
      %916 = vmatpush.bf16.msra.mxu0 %v881
      %917 = vmatpush.bf16.msra.mxu0 %v880
      %918 = vmatpush.bf16.msra.mxu0 %v879
      %919 = vmatmul.bf16.gmra.mxu0 %v687
      %v920 = vpop.f32.mrf.mxu0
      %v921 = vadd.f32 0.0, %v920
      %v922 = vpop.f32.mrf.mxu0
      %v923 = vadd.f32 0.0, %v922
      %924 = vmatmul.bf16.gmra.mxu0 %v689
      %v925 = vpop.f32.mrf.mxu0
      %v926 = vadd.f32 0.0, %v925
      %v927 = vpop.f32.mrf.mxu0
      %v928 = vadd.f32 0.0, %v927
      %929 = vmatmul.bf16.gmra.mxu0 %v691
      %v930 = vpop.f32.mrf.mxu0
      %v931 = vadd.f32 0.0, %v930
      %v932 = vpop.f32.mrf.mxu0
      %v933 = vadd.f32 0.0, %v932
      %934 = vmatmul.bf16.gmra.mxu0 %v693
      %v935 = vpop.f32.mrf.mxu0
      %v936 = vadd.f32 0.0, %v935
      %v937 = vpop.f32.mrf.mxu0
      %v938 = vadd.f32 0.0, %v937
      %939 = vmatmul.bf16.gmra.mxu0 %v695
      %v940 = vpop.f32.mrf.mxu0
      %v941 = vadd.f32 0.0, %v940
      %v942 = vpop.f32.mrf.mxu0
      %v943 = vadd.f32 0.0, %v942
      %944 = vmatmul.bf16.gmra.mxu0 %v697
      %v945 = vpop.f32.mrf.mxu0
      %v946 = vadd.f32 0.0, %v945
      %v947 = vpop.f32.mrf.mxu0
      %v948 = vadd.f32 0.0, %v947
      %949 = vmatmul.bf16.gmra.mxu0 %v699
      %v950 = vpop.f32.mrf.mxu0
      %v951 = vadd.f32 0.0, %v950
      %v952 = vpop.f32.mrf.mxu0
      %v953 = vadd.f32 0.0, %v952
      %954 = vmatmul.bf16.gmra.mxu0 %v701
      %v955 = vpop.f32.mrf.mxu0
      %v956 = vadd.f32 0.0, %v955
      %v957 = vpop.f32.mrf.mxu0
      %v958 = vadd.f32 0.0, %v957
      %959 = vmatmul.bf16.gmra.mxu0 %v703
      %v960 = vpop.f32.mrf.mxu0
      %v961 = vadd.f32 0.0, %v960
      %v962 = vpop.f32.mrf.mxu0
      %v963 = vadd.f32 0.0, %v962
      %964 = vmatmul.bf16.gmra.mxu0 %v705
      %v965 = vpop.f32.mrf.mxu0
      %v966 = vadd.f32 0.0, %v965
      %v967 = vpop.f32.mrf.mxu0
      %v968 = vadd.f32 0.0, %v967
      %969 = vmatmul.bf16.gmra.mxu0 %v707
      %v970 = vpop.f32.mrf.mxu0
      %v971 = vadd.f32 0.0, %v970
      %v972 = vpop.f32.mrf.mxu0
      %v973 = vadd.f32 0.0, %v972
      %974 = vmatmul.bf16.gmra.mxu0 %v709
      %v975 = vpop.f32.mrf.mxu0
      %v976 = vadd.f32 0.0, %v975
      %v977 = vpop.f32.mrf.mxu0
      %v978 = vadd.f32 0.0, %v977
      %979 = vmatmul.bf16.gmra.mxu0 %v711
      %v980 = vpop.f32.mrf.mxu0
      %v981 = vadd.f32 0.0, %v980
      %v982 = vpop.f32.mrf.mxu0
      %v983 = vadd.f32 0.0, %v982
      %984 = vmatmul.bf16.gmra.mxu0 %v713
      %v985 = vpop.f32.mrf.mxu0
      %v986 = vadd.f32 0.0, %v985
      %v987 = vpop.f32.mrf.mxu0
      %v988 = vadd.f32 0.0, %v987
      %989 = vmatmul.bf16.gmra.mxu0 %v715
      %v990 = vpop.f32.mrf.mxu0
      %v991 = vadd.f32 0.0, %v990
      %v992 = vpop.f32.mrf.mxu0
      %v993 = vadd.f32 0.0, %v992
      %994 = vmatmul.bf16.gmra.mxu0 %v717
      %v995 = vpop.f32.mrf.mxu0
      %v996 = vadd.f32 0.0, %v995
      %v997 = vpop.f32.mrf.mxu0
      %v998 = vadd.f32 0.0, %v997
      %999 = vmatmul.bf16.gmra.mxu0 %v719
      %v1000 = vpop.f32.mrf.mxu0
      %v1001 = vadd.f32 0.0, %v1000
      %v1002 = vpop.f32.mrf.mxu0
      %v1003 = vadd.f32 0.0, %v1002
      %1004 = vmatmul.bf16.gmra.mxu0 %v721
      %v1005 = vpop.f32.mrf.mxu0
      %v1006 = vadd.f32 0.0, %v1005
      %v1007 = vpop.f32.mrf.mxu0
      %v1008 = vadd.f32 0.0, %v1007
      %1009 = vmatmul.bf16.gmra.mxu0 %v723
      %v1010 = vpop.f32.mrf.mxu0
      %v1011 = vadd.f32 0.0, %v1010
      %v1012 = vpop.f32.mrf.mxu0
      %v1013 = vadd.f32 0.0, %v1012
      %1014 = vmatmul.bf16.gmra.mxu0 %v725
      %v1015 = vpop.f32.mrf.mxu0
      %v1016 = vadd.f32 0.0, %v1015
      %v1017 = vpop.f32.mrf.mxu0
      %v1018 = vadd.f32 0.0, %v1017
      %1019 = vmatmul.bf16.gmra.mxu0 %v727
      %v1020 = vpop.f32.mrf.mxu0
      %v1021 = vadd.f32 0.0, %v1020
      %v1022 = vpop.f32.mrf.mxu0
      %v1023 = vadd.f32 0.0, %v1022
      %1024 = vmatmul.bf16.gmra.mxu0 %v729
      %v1025 = vpop.f32.mrf.mxu0
      %v1026 = vadd.f32 0.0, %v1025
      %v1027 = vpop.f32.mrf.mxu0
      %v1028 = vadd.f32 0.0, %v1027
      %1029 = vmatmul.bf16.gmra.mxu0 %v731
      %v1030 = vpop.f32.mrf.mxu0
      %v1031 = vadd.f32 0.0, %v1030
      %v1032 = vpop.f32.mrf.mxu0
      %v1033 = vadd.f32 0.0, %v1032
      %1034 = vmatmul.bf16.gmra.mxu0 %v733
      %v1035 = vpop.f32.mrf.mxu0
      %v1036 = vadd.f32 0.0, %v1035
      %v1037 = vpop.f32.mrf.mxu0
      %v1038 = vadd.f32 0.0, %v1037
      %1039 = vmatmul.bf16.gmra.mxu0 %v735
      %v1040 = vpop.f32.mrf.mxu0
      %v1041 = vadd.f32 0.0, %v1040
      %v1042 = vpop.f32.mrf.mxu0
      %v1043 = vadd.f32 0.0, %v1042
      %1044 = vmatmul.bf16.gmra.mxu0 %v737
      %v1045 = vpop.f32.mrf.mxu0
      %v1046 = vadd.f32 0.0, %v1045
      %v1047 = vpop.f32.mrf.mxu0
      %v1048 = vadd.f32 0.0, %v1047
      %1049 = vmatmul.bf16.gmra.mxu0 %v739
      %v1050 = vpop.f32.mrf.mxu0
      %v1051 = vadd.f32 0.0, %v1050
      %v1052 = vpop.f32.mrf.mxu0
      %v1053 = vadd.f32 0.0, %v1052
      %1054 = vmatmul.bf16.gmra.mxu0 %v741
      %v1055 = vpop.f32.mrf.mxu0
      %v1056 = vadd.f32 0.0, %v1055
      %v1057 = vpop.f32.mrf.mxu0
      %v1058 = vadd.f32 0.0, %v1057
      %1059 = vmatmul.bf16.gmra.mxu0 %v743
      %v1060 = vpop.f32.mrf.mxu0
      %v1061 = vadd.f32 0.0, %v1060
      %v1062 = vpop.f32.mrf.mxu0
      %v1063 = vadd.f32 0.0, %v1062
      %1064 = vmatmul.bf16.gmra.mxu0 %v745
      %v1065 = vpop.f32.mrf.mxu0
      %v1066 = vadd.f32 0.0, %v1065
      %v1067 = vpop.f32.mrf.mxu0
      %v1068 = vadd.f32 0.0, %v1067
      %1069 = vmatmul.bf16.gmra.mxu0 %v747
      %v1070 = vpop.f32.mrf.mxu0
      %v1071 = vadd.f32 0.0, %v1070
      %v1072 = vpop.f32.mrf.mxu0
      %v1073 = vadd.f32 0.0, %v1072
      %1074 = vmatmul.bf16.gmra.mxu0 %v749
      %v1075 = vpop.f32.mrf.mxu0
      %v1076 = vadd.f32 0.0, %v1075
      %v1077 = vpop.f32.mrf.mxu0
      %v1078 = vadd.f32 0.0, %v1077
      %1079 = vdwg.mxu0
      %1080 = vmatpush.bf16.msra.mxu0 %v894
      %1081 = vmatpush.bf16.msra.mxu0 %v893
      %1082 = vmatpush.bf16.msra.mxu0 %v892
      %1083 = vmatpush.bf16.msra.mxu0 %v891
      %1084 = vmatpush.bf16.msra.mxu0 %v890
      %1085 = vmatpush.bf16.msra.mxu0 %v889
      %1086 = vmatpush.bf16.msra.mxu0 %v888
      %1087 = vmatpush.bf16.msra.mxu0 %v887
      %1088 = vmatmul.bf16.gmra.mxu0 %v688
      %v1089 = vpop.f32.mrf.mxu0
      %v1090 = vadd.f32 %v921, %v1089
      %v1091 = vpop.f32.mrf.mxu0
      %v1092 = vadd.f32 %v923, %v1091
      %1093 = vmatmul.bf16.gmra.mxu0 %v690
      %v1094 = vpop.f32.mrf.mxu0
      %v1095 = vadd.f32 %v926, %v1094
      %v1096 = vpop.f32.mrf.mxu0
      %v1097 = vadd.f32 %v928, %v1096
      %1098 = vmatmul.bf16.gmra.mxu0 %v692
      %v1099 = vpop.f32.mrf.mxu0
      %v1100 = vadd.f32 %v931, %v1099
      %v1101 = vpop.f32.mrf.mxu0
      %v1102 = vadd.f32 %v933, %v1101
      %1103 = vmatmul.bf16.gmra.mxu0 %v694
      %v1104 = vpop.f32.mrf.mxu0
      %v1105 = vadd.f32 %v936, %v1104
      %v1106 = vpop.f32.mrf.mxu0
      %v1107 = vadd.f32 %v938, %v1106
      %1108 = vmatmul.bf16.gmra.mxu0 %v696
      %v1109 = vpop.f32.mrf.mxu0
      %v1110 = vadd.f32 %v941, %v1109
      %v1111 = vpop.f32.mrf.mxu0
      %v1112 = vadd.f32 %v943, %v1111
      %1113 = vmatmul.bf16.gmra.mxu0 %v698
      %v1114 = vpop.f32.mrf.mxu0
      %v1115 = vadd.f32 %v946, %v1114
      %v1116 = vpop.f32.mrf.mxu0
      %v1117 = vadd.f32 %v948, %v1116
      %1118 = vmatmul.bf16.gmra.mxu0 %v700
      %v1119 = vpop.f32.mrf.mxu0
      %v1120 = vadd.f32 %v951, %v1119
      %v1121 = vpop.f32.mrf.mxu0
      %v1122 = vadd.f32 %v953, %v1121
      %1123 = vmatmul.bf16.gmra.mxu0 %v702
      %v1124 = vpop.f32.mrf.mxu0
      %v1125 = vadd.f32 %v956, %v1124
      %v1126 = vpop.f32.mrf.mxu0
      %v1127 = vadd.f32 %v958, %v1126
      %1128 = vmatmul.bf16.gmra.mxu0 %v704
      %v1129 = vpop.f32.mrf.mxu0
      %v1130 = vadd.f32 %v961, %v1129
      %v1131 = vpop.f32.mrf.mxu0
      %v1132 = vadd.f32 %v963, %v1131
      %1133 = vmatmul.bf16.gmra.mxu0 %v706
      %v1134 = vpop.f32.mrf.mxu0
      %v1135 = vadd.f32 %v966, %v1134
      %v1136 = vpop.f32.mrf.mxu0
      %v1137 = vadd.f32 %v968, %v1136
      %1138 = vmatmul.bf16.gmra.mxu0 %v708
      %v1139 = vpop.f32.mrf.mxu0
      %v1140 = vadd.f32 %v971, %v1139
      %v1141 = vpop.f32.mrf.mxu0
      %v1142 = vadd.f32 %v973, %v1141
      %1143 = vmatmul.bf16.gmra.mxu0 %v710
      %v1144 = vpop.f32.mrf.mxu0
      %v1145 = vadd.f32 %v976, %v1144
      %v1146 = vpop.f32.mrf.mxu0
      %v1147 = vadd.f32 %v978, %v1146
      %1148 = vmatmul.bf16.gmra.mxu0 %v712
      %v1149 = vpop.f32.mrf.mxu0
      %v1150 = vadd.f32 %v981, %v1149
      %v1151 = vpop.f32.mrf.mxu0
      %v1152 = vadd.f32 %v983, %v1151
      %1153 = vmatmul.bf16.gmra.mxu0 %v714
      %v1154 = vpop.f32.mrf.mxu0
      %v1155 = vadd.f32 %v986, %v1154
      %v1156 = vpop.f32.mrf.mxu0
      %v1157 = vadd.f32 %v988, %v1156
      %1158 = vmatmul.bf16.gmra.mxu0 %v716
      %v1159 = vpop.f32.mrf.mxu0
      %v1160 = vadd.f32 %v991, %v1159
      %v1161 = vpop.f32.mrf.mxu0
      %v1162 = vadd.f32 %v993, %v1161
      %1163 = vmatmul.bf16.gmra.mxu0 %v718
      %v1164 = vpop.f32.mrf.mxu0
      %v1165 = vadd.f32 %v996, %v1164
      %v1166 = vpop.f32.mrf.mxu0
      %v1167 = vadd.f32 %v998, %v1166
      %1168 = vmatmul.bf16.gmra.mxu0 %v720
      %v1169 = vpop.f32.mrf.mxu0
      %v1170 = vadd.f32 %v1001, %v1169
      %v1171 = vpop.f32.mrf.mxu0
      %v1172 = vadd.f32 %v1003, %v1171
      %1173 = vmatmul.bf16.gmra.mxu0 %v722
      %v1174 = vpop.f32.mrf.mxu0
      %v1175 = vadd.f32 %v1006, %v1174
      %v1176 = vpop.f32.mrf.mxu0
      %v1177 = vadd.f32 %v1008, %v1176
      %1178 = vmatmul.bf16.gmra.mxu0 %v724
      %v1179 = vpop.f32.mrf.mxu0
      %v1180 = vadd.f32 %v1011, %v1179
      %v1181 = vpop.f32.mrf.mxu0
      %v1182 = vadd.f32 %v1013, %v1181
      %1183 = vmatmul.bf16.gmra.mxu0 %v726
      %v1184 = vpop.f32.mrf.mxu0
      %v1185 = vadd.f32 %v1016, %v1184
      %v1186 = vpop.f32.mrf.mxu0
      %v1187 = vadd.f32 %v1018, %v1186
      %1188 = vmatmul.bf16.gmra.mxu0 %v728
      %v1189 = vpop.f32.mrf.mxu0
      %v1190 = vadd.f32 %v1021, %v1189
      %v1191 = vpop.f32.mrf.mxu0
      %v1192 = vadd.f32 %v1023, %v1191
      %1193 = vmatmul.bf16.gmra.mxu0 %v730
      %v1194 = vpop.f32.mrf.mxu0
      %v1195 = vadd.f32 %v1026, %v1194
      %v1196 = vpop.f32.mrf.mxu0
      %v1197 = vadd.f32 %v1028, %v1196
      %1198 = vmatmul.bf16.gmra.mxu0 %v732
      %v1199 = vpop.f32.mrf.mxu0
      %v1200 = vadd.f32 %v1031, %v1199
      %v1201 = vpop.f32.mrf.mxu0
      %v1202 = vadd.f32 %v1033, %v1201
      %1203 = vmatmul.bf16.gmra.mxu0 %v734
      %v1204 = vpop.f32.mrf.mxu0
      %v1205 = vadd.f32 %v1036, %v1204
      %v1206 = vpop.f32.mrf.mxu0
      %v1207 = vadd.f32 %v1038, %v1206
      %1208 = vmatmul.bf16.gmra.mxu0 %v736
      %v1209 = vpop.f32.mrf.mxu0
      %v1210 = vadd.f32 %v1041, %v1209
      %v1211 = vpop.f32.mrf.mxu0
      %v1212 = vadd.f32 %v1043, %v1211
      %1213 = vmatmul.bf16.gmra.mxu0 %v738
      %v1214 = vpop.f32.mrf.mxu0
      %v1215 = vadd.f32 %v1046, %v1214
      %v1216 = vpop.f32.mrf.mxu0
      %v1217 = vadd.f32 %v1048, %v1216
      %1218 = vmatmul.bf16.gmra.mxu0 %v740
      %v1219 = vpop.f32.mrf.mxu0
      %v1220 = vadd.f32 %v1051, %v1219
      %v1221 = vpop.f32.mrf.mxu0
      %v1222 = vadd.f32 %v1053, %v1221
      %1223 = vmatmul.bf16.gmra.mxu0 %v742
      %v1224 = vpop.f32.mrf.mxu0
      %v1225 = vadd.f32 %v1056, %v1224
      %v1226 = vpop.f32.mrf.mxu0
      %v1227 = vadd.f32 %v1058, %v1226
      %1228 = vmatmul.bf16.gmra.mxu0 %v744
      %v1229 = vpop.f32.mrf.mxu0
      %v1230 = vadd.f32 %v1061, %v1229
      %v1231 = vpop.f32.mrf.mxu0
      %v1232 = vadd.f32 %v1063, %v1231
      %1233 = vmatmul.bf16.gmra.mxu0 %v746
      %v1234 = vpop.f32.mrf.mxu0
      %v1235 = vadd.f32 %v1066, %v1234
      %v1236 = vpop.f32.mrf.mxu0
      %v1237 = vadd.f32 %v1068, %v1236
      %1238 = vmatmul.bf16.gmra.mxu0 %v748
      %v1239 = vpop.f32.mrf.mxu0
      %v1240 = vadd.f32 %v1071, %v1239
      %v1241 = vpop.f32.mrf.mxu0
      %v1242 = vadd.f32 %v1073, %v1241
      %1243 = vmatmul.bf16.gmra.mxu0 %v750
      %v1244 = vpop.f32.mrf.mxu0
      %v1245 = vadd.f32 %v1076, %v1244
      %v1246 = vpop.f32.mrf.mxu0
      %v1247 = vadd.f32 %v1078, %v1246
      %1248 = vdwg.mxu0
      %v1249 = vadd.f32 %v335, %v1090
      %v1250 = vadd.f32 %v336, %v1092
      %v1251 = vadd.f32 %v337, %v1095
      %v1252 = vadd.f32 %v338, %v1097
      %v1253 = vadd.f32 %v339, %v1100
      %v1254 = vadd.f32 %v340, %v1102
      %v1255 = vadd.f32 %v341, %v1105
      %v1256 = vadd.f32 %v342, %v1107
      %v1257 = vadd.f32 %v343, %v1110
      %v1258 = vadd.f32 %v344, %v1112
      %v1259 = vadd.f32 %v345, %v1115
      %v1260 = vadd.f32 %v346, %v1117
      %v1261 = vadd.f32 %v347, %v1120
      %v1262 = vadd.f32 %v348, %v1122
      %v1263 = vadd.f32 %v349, %v1125
      %v1264 = vadd.f32 %v350, %v1127
      %v1265 = vadd.f32 %v351, %v1130
      %v1266 = vadd.f32 %v352, %v1132
      %v1267 = vadd.f32 %v353, %v1135
      %v1268 = vadd.f32 %v354, %v1137
      %v1269 = vadd.f32 %v355, %v1140
      %v1270 = vadd.f32 %v356, %v1142
      %v1271 = vadd.f32 %v357, %v1145
      %v1272 = vadd.f32 %v358, %v1147
      %v1273 = vadd.f32 %v359, %v1150
      %v1274 = vadd.f32 %v360, %v1152
      %v1275 = vadd.f32 %v361, %v1155
      %v1276 = vadd.f32 %v362, %v1157
      %v1277 = vadd.f32 %v363, %v1160
      %v1278 = vadd.f32 %v364, %v1162
      %v1279 = vadd.f32 %v365, %v1165
      %v1280 = vadd.f32 %v366, %v1167
      %v1281 = vadd.f32 %v367, %v1170
      %v1282 = vadd.f32 %v368, %v1172
      %v1283 = vadd.f32 %v369, %v1175
      %v1284 = vadd.f32 %v370, %v1177
      %v1285 = vadd.f32 %v371, %v1180
      %v1286 = vadd.f32 %v372, %v1182
      %v1287 = vadd.f32 %v373, %v1185
      %v1288 = vadd.f32 %v374, %v1187
      %v1289 = vadd.f32 %v375, %v1190
      %v1290 = vadd.f32 %v376, %v1192
      %v1291 = vadd.f32 %v377, %v1195
      %v1292 = vadd.f32 %v378, %v1197
      %v1293 = vadd.f32 %v379, %v1200
      %v1294 = vadd.f32 %v380, %v1202
      %v1295 = vadd.f32 %v381, %v1205
      %v1296 = vadd.f32 %v382, %v1207
      %v1297 = vadd.f32 %v383, %v1210
      %v1298 = vadd.f32 %v384, %v1212
      %v1299 = vadd.f32 %v385, %v1215
      %v1300 = vadd.f32 %v386, %v1217
      %v1301 = vadd.f32 %v387, %v1220
      %v1302 = vadd.f32 %v388, %v1222
      %v1303 = vadd.f32 %v389, %v1225
      %v1304 = vadd.f32 %v390, %v1227
      %v1305 = vadd.f32 %v391, %v1230
      %v1306 = vadd.f32 %v392, %v1232
      %v1307 = vadd.f32 %v393, %v1235
      %v1308 = vadd.f32 %v394, %v1237
      %v1309 = vadd.f32 %v395, %v1240
      %v1310 = vadd.f32 %v396, %v1242
      %v1311 = vadd.f32 %v397, %v1245
      %v1312 = vadd.f32 %v398, %v1247
      %1313 = vst [vmem:[#allocation2] sm:$0xff] %v1249
      %1314 = vst [vmem:[#allocation2 + $0x8] sm:$0xff] %v1250
      %1315 = vst [vmem:[#allocation2 + $0x10] sm:$0xff] %v1251
      %1316 = vst [vmem:[#allocation2 + $0x18] sm:$0xff] %v1252
      %1317 = vst [vmem:[#allocation2 + $0x20] sm:$0xff] %v1253
      %1318 = vst [vmem:[#allocation2 + $0x28] sm:$0xff] %v1254
      %1319 = vst [vmem:[#allocation2 + $0x30] sm:$0xff] %v1255
      %1320 = vst [vmem:[#allocation2 + $0x38] sm:$0xff] %v1256
      %1321 = vst [vmem:[#allocation2 + $0x40] sm:$0xff] %v1257
      %1322 = vst [vmem:[#allocation2 + $0x48] sm:$0xff] %v1258
      %1323 = vst [vmem:[#allocation2 + $0x50] sm:$0xff] %v1259
      %1324 = vst [vmem:[#allocation2 + $0x58] sm:$0xff] %v1260
      %1325 = vst [vmem:[#allocation2 + $0x60] sm:$0xff] %v1261
      %1326 = vst [vmem:[#allocation2 + $0x68] sm:$0xff] %v1262
      %1327 = vst [vmem:[#allocation2 + $0x70] sm:$0xff] %v1263
      %1328 = vst [vmem:[#allocation2 + $0x78] sm:$0xff] %v1264
      %1329 = vst [vmem:[#allocation2 + $0x80] sm:$0xff] %v1265
      %1330 = vst [vmem:[#allocation2 + $0x88] sm:$0xff] %v1266
      %1331 = vst [vmem:[#allocation2 + $0x90] sm:$0xff] %v1267
      %1332 = vst [vmem:[#allocation2 + $0x98] sm:$0xff] %v1268
      %1333 = vst [vmem:[#allocation2 + $0xa0] sm:$0xff] %v1269
      %1334 = vst [vmem:[#allocation2 + $0xa8] sm:$0xff] %v1270
      %1335 = vst [vmem:[#allocation2 + $0xb0] sm:$0xff] %v1271
      %1336 = vst [vmem:[#allocation2 + $0xb8] sm:$0xff] %v1272
      %1337 = vst [vmem:[#allocation2 + $0xc0] sm:$0xff] %v1273
      %1338 = vst [vmem:[#allocation2 + $0xc8] sm:$0xff] %v1274
      %1339 = vst [vmem:[#allocation2 + $0xd0] sm:$0xff] %v1275
      %1340 = vst [vmem:[#allocation2 + $0xd8] sm:$0xff] %v1276
      %1341 = vst [vmem:[#allocation2 + $0xe0] sm:$0xff] %v1277
      %1342 = vst [vmem:[#allocation2 + $0xe8] sm:$0xff] %v1278
      %1343 = vst [vmem:[#allocation2 + $0xf0] sm:$0xff] %v1279
      %1344 = vst [vmem:[#allocation2 + $0xf8] sm:$0xff] %v1280
      %1345 = vst [vmem:[#allocation2 + $0x100] sm:$0xff] %v1281
      %1346 = vst [vmem:[#allocation2 + $0x108] sm:$0xff] %v1282
      %1347 = vst [vmem:[#allocation2 + $0x110] sm:$0xff] %v1283
      %1348 = vst [vmem:[#allocation2 + $0x118] sm:$0xff] %v1284
      %1349 = vst [vmem:[#allocation2 + $0x120] sm:$0xff] %v1285
      %1350 = vst [vmem:[#allocation2 + $0x128] sm:$0xff] %v1286
      %1351 = vst [vmem:[#allocation2 + $0x130] sm:$0xff] %v1287
      %1352 = vst [vmem:[#allocation2 + $0x138] sm:$0xff] %v1288
      %1353 = vst [vmem:[#allocation2 + $0x140] sm:$0xff] %v1289
      %1354 = vst [vmem:[#allocation2 + $0x148] sm:$0xff] %v1290
      %1355 = vst [vmem:[#allocation2 + $0x150] sm:$0xff] %v1291
      %1356 = vst [vmem:[#allocation2 + $0x158] sm:$0xff] %v1292
      %1357 = vst [vmem:[#allocation2 + $0x160] sm:$0xff] %v1293
      %1358 = vst [vmem:[#allocation2 + $0x168] sm:$0xff] %v1294
      %1359 = vst [vmem:[#allocation2 + $0x170] sm:$0xff] %v1295
      %1360 = vst [vmem:[#allocation2 + $0x178] sm:$0xff] %v1296
      %1361 = vst [vmem:[#allocation2 + $0x180] sm:$0xff] %v1297
      %1362 = vst [vmem:[#allocation2 + $0x188] sm:$0xff] %v1298
      %1363 = vst [vmem:[#allocation2 + $0x190] sm:$0xff] %v1299
      %1364 = vst [vmem:[#allocation2 + $0x198] sm:$0xff] %v1300
      %1365 = vst [vmem:[#allocation2 + $0x1a0] sm:$0xff] %v1301
      %1366 = vst [vmem:[#allocation2 + $0x1a8] sm:$0xff] %v1302
      %1367 = vst [vmem:[#allocation2 + $0x1b0] sm:$0xff] %v1303
      %1368 = vst [vmem:[#allocation2 + $0x1b8] sm:$0xff] %v1304
      %1369 = vst [vmem:[#allocation2 + $0x1c0] sm:$0xff] %v1305
      %1370 = vst [vmem:[#allocation2 + $0x1c8] sm:$0xff] %v1306
      %1371 = vst [vmem:[#allocation2 + $0x1d0] sm:$0xff] %v1307
      %1372 = vst [vmem:[#allocation2 + $0x1d8] sm:$0xff] %v1308
      %1373 = vst [vmem:[#allocation2 + $0x1e0] sm:$0xff] %v1309
      %1374 = vst [vmem:[#allocation2 + $0x1e8] sm:$0xff] %v1310
      %1375 = vst [vmem:[#allocation2 + $0x1f0] sm:$0xff] %v1311
      %1376 = vst [vmem:[#allocation2 + $0x1f8] sm:$0xff] %v1312
      // Predicated region
      $region37: #{_jit_stem.2} parent=31 // pred_check
        %p1377 = pneg %p267
      $region38: #{_jit_stem.2} parent=31 // pred_check_branch
        %1379 = sbr.rel (%p1377) target = $region40
      $region39: #{_jit_stem.2} parent=31 // pred_region
        %v1380 = vld [vmem:[#allocation2] sm:$0xff]
        %v1381 = vld [vmem:[#allocation2 + $0x8] sm:$0xff]
        %v1382 = vld [vmem:[#allocation2 + $0x10] sm:$0xff]
        %v1383 = vld [vmem:[#allocation2 + $0x18] sm:$0xff]
        %v1384 = vld [vmem:[#allocation2 + $0x20] sm:$0xff]
        %v1385 = vld [vmem:[#allocation2 + $0x28] sm:$0xff]
        %v1386 = vld [vmem:[#allocation2 + $0x30] sm:$0xff]
        %v1387 = vld [vmem:[#allocation2 + $0x38] sm:$0xff]
        %v1388 = vld [vmem:[#allocation2 + $0x40] sm:$0xff]
        %v1389 = vld [vmem:[#allocation2 + $0x48] sm:$0xff]
        %v1390 = vld [vmem:[#allocation2 + $0x50] sm:$0xff]
        %v1391 = vld [vmem:[#allocation2 + $0x58] sm:$0xff]
        %v1392 = vld [vmem:[#allocation2 + $0x60] sm:$0xff]
        %v1393 = vld [vmem:[#allocation2 + $0x68] sm:$0xff]
        %v1394 = vld [vmem:[#allocation2 + $0x70] sm:$0xff]
        %v1395 = vld [vmem:[#allocation2 + $0x78] sm:$0xff]
        %v1396 = vld [vmem:[#allocation2 + $0x80] sm:$0xff]
        %v1397 = vld [vmem:[#allocation2 + $0x88] sm:$0xff]
        %v1398 = vld [vmem:[#allocation2 + $0x90] sm:$0xff]
        %v1399 = vld [vmem:[#allocation2 + $0x98] sm:$0xff]
        %v1400 = vld [vmem:[#allocation2 + $0xa0] sm:$0xff]
        %v1401 = vld [vmem:[#allocation2 + $0xa8] sm:$0xff]
        %v1402 = vld [vmem:[#allocation2 + $0xb0] sm:$0xff]
        %v1403 = vld [vmem:[#allocation2 + $0xb8] sm:$0xff]
        %v1404 = vld [vmem:[#allocation2 + $0xc0] sm:$0xff]
        %v1405 = vld [vmem:[#allocation2 + $0xc8] sm:$0xff]
        %v1406 = vld [vmem:[#allocation2 + $0xd0] sm:$0xff]
        %v1407 = vld [vmem:[#allocation2 + $0xd8] sm:$0xff]
        %v1408 = vld [vmem:[#allocation2 + $0xe0] sm:$0xff]
        %v1409 = vld [vmem:[#allocation2 + $0xe8] sm:$0xff]
        %v1410 = vld [vmem:[#allocation2 + $0xf0] sm:$0xff]
        %v1411 = vld [vmem:[#allocation2 + $0xf8] sm:$0xff]
        %v1412 = vld [vmem:[#allocation2 + $0x100] sm:$0xff]
        %v1413 = vld [vmem:[#allocation2 + $0x108] sm:$0xff]
        %v1414 = vld [vmem:[#allocation2 + $0x110] sm:$0xff]
        %v1415 = vld [vmem:[#allocation2 + $0x118] sm:$0xff]
        %v1416 = vld [vmem:[#allocation2 + $0x120] sm:$0xff]
        %v1417 = vld [vmem:[#allocation2 + $0x128] sm:$0xff]
        %v1418 = vld [vmem:[#allocation2 + $0x130] sm:$0xff]
        %v1419 = vld [vmem:[#allocation2 + $0x138] sm:$0xff]
        %v1420 = vld [vmem:[#allocation2 + $0x140] sm:$0xff]
        %v1421 = vld [vmem:[#allocation2 + $0x148] sm:$0xff]
        %v1422 = vld [vmem:[#allocation2 + $0x150] sm:$0xff]
        %v1423 = vld [vmem:[#allocation2 + $0x158] sm:$0xff]
        %v1424 = vld [vmem:[#allocation2 + $0x160] sm:$0xff]
        %v1425 = vld [vmem:[#allocation2 + $0x168] sm:$0xff]
        %v1426 = vld [vmem:[#allocation2 + $0x170] sm:$0xff]
        %v1427 = vld [vmem:[#allocation2 + $0x178] sm:$0xff]
        %v1428 = vld [vmem:[#allocation2 + $0x180] sm:$0xff]
        %v1429 = vld [vmem:[#allocation2 + $0x188] sm:$0xff]
        %v1430 = vld [vmem:[#allocation2 + $0x190] sm:$0xff]
        %v1431 = vld [vmem:[#allocation2 + $0x198] sm:$0xff]
        %v1432 = vld [vmem:[#allocation2 + $0x1a0] sm:$0xff]
        %v1433 = vld [vmem:[#allocation2 + $0x1a8] sm:$0xff]
        %v1434 = vld [vmem:[#allocation2 + $0x1b0] sm:$0xff]
        %v1435 = vld [vmem:[#allocation2 + $0x1b8] sm:$0xff]
        %v1436 = vld [vmem:[#allocation2 + $0x1c0] sm:$0xff]
        %v1437 = vld [vmem:[#allocation2 + $0x1c8] sm:$0xff]
        %v1438 = vld [vmem:[#allocation2 + $0x1d0] sm:$0xff]
        %v1439 = vld [vmem:[#allocation2 + $0x1d8] sm:$0xff]
        %v1440 = vld [vmem:[#allocation2 + $0x1e0] sm:$0xff]
        %v1441 = vld [vmem:[#allocation2 + $0x1e8] sm:$0xff]
        %v1442 = vld [vmem:[#allocation2 + $0x1f0] sm:$0xff]
        %v1443 = vld [vmem:[#allocation2 + $0x1f8] sm:$0xff]
        %v1444 = vld [vmem:[%s257] sm:$0x1]
        %v1446 = vperm.slane %v1444, 0
        %v1448 = vadd.f32 %v1380, %v1446
        %v1449 = vadd.f32 %v1381, %v1446
        %v1450 = vadd.f32 %v1382, %v1446
        %v1451 = vadd.f32 %v1383, %v1446
        %v1452 = vadd.f32 %v1384, %v1446
        %v1453 = vadd.f32 %v1385, %v1446
        %v1454 = vadd.f32 %v1386, %v1446
        %v1455 = vadd.f32 %v1387, %v1446
        %v1456 = vadd.f32 %v1388, %v1446
        %v1457 = vadd.f32 %v1389, %v1446
        %v1458 = vadd.f32 %v1390, %v1446
        %v1459 = vadd.f32 %v1391, %v1446
        %v1460 = vadd.f32 %v1392, %v1446
        %v1461 = vadd.f32 %v1393, %v1446
        %v1462 = vadd.f32 %v1394, %v1446
        %v1463 = vadd.f32 %v1395, %v1446
        %v1464 = vadd.f32 %v1396, %v1446
        %v1465 = vadd.f32 %v1397, %v1446
        %v1466 = vadd.f32 %v1398, %v1446
        %v1467 = vadd.f32 %v1399, %v1446
        %v1468 = vadd.f32 %v1400, %v1446
        %v1469 = vadd.f32 %v1401, %v1446
        %v1470 = vadd.f32 %v1402, %v1446
        %v1471 = vadd.f32 %v1403, %v1446
        %v1472 = vadd.f32 %v1404, %v1446
        %v1473 = vadd.f32 %v1405, %v1446
        %v1474 = vadd.f32 %v1406, %v1446
        %v1475 = vadd.f32 %v1407, %v1446
        %v1476 = vadd.f32 %v1408, %v1446
        %v1477 = vadd.f32 %v1409, %v1446
        %v1478 = vadd.f32 %v1410, %v1446
        %v1479 = vadd.f32 %v1411, %v1446
        %v1480 = vadd.f32 %v1412, %v1446
        %v1481 = vadd.f32 %v1413, %v1446
        %v1482 = vadd.f32 %v1414, %v1446
        %v1483 = vadd.f32 %v1415, %v1446
        %v1484 = vadd.f32 %v1416, %v1446
        %v1485 = vadd.f32 %v1417, %v1446
        %v1486 = vadd.f32 %v1418, %v1446
        %v1487 = vadd.f32 %v1419, %v1446
        %v1488 = vadd.f32 %v1420, %v1446
        %v1489 = vadd.f32 %v1421, %v1446
        %v1490 = vadd.f32 %v1422, %v1446
        %v1491 = vadd.f32 %v1423, %v1446
        %v1492 = vadd.f32 %v1424, %v1446
        %v1493 = vadd.f32 %v1425, %v1446
        %v1494 = vadd.f32 %v1426, %v1446
        %v1495 = vadd.f32 %v1427, %v1446
        %v1496 = vadd.f32 %v1428, %v1446
        %v1497 = vadd.f32 %v1429, %v1446
        %v1498 = vadd.f32 %v1430, %v1446
        %v1499 = vadd.f32 %v1431, %v1446
        %v1500 = vadd.f32 %v1432, %v1446
        %v1501 = vadd.f32 %v1433, %v1446
        %v1502 = vadd.f32 %v1434, %v1446
        %v1503 = vadd.f32 %v1435, %v1446
        %v1504 = vadd.f32 %v1436, %v1446
        %v1505 = vadd.f32 %v1437, %v1446
        %v1506 = vadd.f32 %v1438, %v1446
        %v1507 = vadd.f32 %v1439, %v1446
        %v1508 = vadd.f32 %v1440, %v1446
        %v1509 = vadd.f32 %v1441, %v1446
        %v1510 = vadd.f32 %v1442, %v1446
        %v1511 = vadd.f32 %v1443, %v1446
        %v1512 = vmax.f32 %v1448, 0.0
        %v1513 = vmax.f32 %v1449, 0.0
        %v1514 = vmax.f32 %v1450, 0.0
        %v1515 = vmax.f32 %v1451, 0.0
        %v1516 = vmax.f32 %v1452, 0.0
        %v1517 = vmax.f32 %v1453, 0.0
        %v1518 = vmax.f32 %v1454, 0.0
        %v1519 = vmax.f32 %v1455, 0.0
        %v1520 = vmax.f32 %v1456, 0.0
        %v1521 = vmax.f32 %v1457, 0.0
        %v1522 = vmax.f32 %v1458, 0.0
        %v1523 = vmax.f32 %v1459, 0.0
        %v1524 = vmax.f32 %v1460, 0.0
        %v1525 = vmax.f32 %v1461, 0.0
        %v1526 = vmax.f32 %v1462, 0.0
        %v1527 = vmax.f32 %v1463, 0.0
        %v1528 = vmax.f32 %v1464, 0.0
        %v1529 = vmax.f32 %v1465, 0.0
        %v1530 = vmax.f32 %v1466, 0.0
        %v1531 = vmax.f32 %v1467, 0.0
        %v1532 = vmax.f32 %v1468, 0.0
        %v1533 = vmax.f32 %v1469, 0.0
        %v1534 = vmax.f32 %v1470, 0.0
        %v1535 = vmax.f32 %v1471, 0.0
        %v1536 = vmax.f32 %v1472, 0.0
        %v1537 = vmax.f32 %v1473, 0.0
        %v1538 = vmax.f32 %v1474, 0.0
        %v1539 = vmax.f32 %v1475, 0.0
        %v1540 = vmax.f32 %v1476, 0.0
        %v1541 = vmax.f32 %v1477, 0.0
        %v1542 = vmax.f32 %v1478, 0.0
        %v1543 = vmax.f32 %v1479, 0.0
        %v1544 = vmax.f32 %v1480, 0.0
        %v1545 = vmax.f32 %v1481, 0.0
        %v1546 = vmax.f32 %v1482, 0.0
        %v1547 = vmax.f32 %v1483, 0.0
        %v1548 = vmax.f32 %v1484, 0.0
        %v1549 = vmax.f32 %v1485, 0.0
        %v1550 = vmax.f32 %v1486, 0.0
        %v1551 = vmax.f32 %v1487, 0.0
        %v1552 = vmax.f32 %v1488, 0.0
        %v1553 = vmax.f32 %v1489, 0.0
        %v1554 = vmax.f32 %v1490, 0.0
        %v1555 = vmax.f32 %v1491, 0.0
        %v1556 = vmax.f32 %v1492, 0.0
        %v1557 = vmax.f32 %v1493, 0.0
        %v1558 = vmax.f32 %v1494, 0.0
        %v1559 = vmax.f32 %v1495, 0.0
        %v1560 = vmax.f32 %v1496, 0.0
        %v1561 = vmax.f32 %v1497, 0.0
        %v1562 = vmax.f32 %v1498, 0.0
        %v1563 = vmax.f32 %v1499, 0.0
        %v1564 = vmax.f32 %v1500, 0.0
        %v1565 = vmax.f32 %v1501, 0.0
        %v1566 = vmax.f32 %v1502, 0.0
        %v1567 = vmax.f32 %v1503, 0.0
        %v1568 = vmax.f32 %v1504, 0.0
        %v1569 = vmax.f32 %v1505, 0.0
        %v1570 = vmax.f32 %v1506, 0.0
        %v1571 = vmax.f32 %v1507, 0.0
        %v1572 = vmax.f32 %v1508, 0.0
        %v1573 = vmax.f32 %v1509, 0.0
        %v1574 = vmax.f32 %v1510, 0.0
        %v1575 = vmax.f32 %v1511, 0.0
        %v1576 = vpack.c.bf16 %v1512, %v1512
        %v1577 = vpack.c.bf16 %v1513, %v1513
        %v1578 = vpack.c.bf16 %v1514, %v1514
        %v1579 = vpack.c.bf16 %v1515, %v1515
        %v1580 = vpack.c.bf16 %v1516, %v1516
        %v1581 = vpack.c.bf16 %v1517, %v1517
        %v1582 = vpack.c.bf16 %v1518, %v1518
        %v1583 = vpack.c.bf16 %v1519, %v1519
        %v1584 = vpack.c.bf16 %v1520, %v1520
        %v1585 = vpack.c.bf16 %v1521, %v1521
        %v1586 = vpack.c.bf16 %v1522, %v1522
        %v1587 = vpack.c.bf16 %v1523, %v1523
        %v1588 = vpack.c.bf16 %v1524, %v1524
        %v1589 = vpack.c.bf16 %v1525, %v1525
        %v1590 = vpack.c.bf16 %v1526, %v1526
        %v1591 = vpack.c.bf16 %v1527, %v1527
        %v1592 = vpack.c.bf16 %v1528, %v1528
        %v1593 = vpack.c.bf16 %v1529, %v1529
        %v1594 = vpack.c.bf16 %v1530, %v1530
        %v1595 = vpack.c.bf16 %v1531, %v1531
        %v1596 = vpack.c.bf16 %v1532, %v1532
        %v1597 = vpack.c.bf16 %v1533, %v1533
        %v1598 = vpack.c.bf16 %v1534, %v1534
        %v1599 = vpack.c.bf16 %v1535, %v1535
        %v1600 = vpack.c.bf16 %v1536, %v1536
        %v1601 = vpack.c.bf16 %v1537, %v1537
        %v1602 = vpack.c.bf16 %v1538, %v1538
        %v1603 = vpack.c.bf16 %v1539, %v1539
        %v1604 = vpack.c.bf16 %v1540, %v1540
        %v1605 = vpack.c.bf16 %v1541, %v1541
        %v1606 = vpack.c.bf16 %v1542, %v1542
        %v1607 = vpack.c.bf16 %v1543, %v1543
        %v1608 = vpack.c.bf16 %v1544, %v1544
        %v1609 = vpack.c.bf16 %v1545, %v1545
        %v1610 = vpack.c.bf16 %v1546, %v1546
        %v1611 = vpack.c.bf16 %v1547, %v1547
        %v1612 = vpack.c.bf16 %v1548, %v1548
        %v1613 = vpack.c.bf16 %v1549, %v1549
        %v1614 = vpack.c.bf16 %v1550, %v1550
        %v1615 = vpack.c.bf16 %v1551, %v1551
        %v1616 = vpack.c.bf16 %v1552, %v1552
        %v1617 = vpack.c.bf16 %v1553, %v1553
        %v1618 = vpack.c.bf16 %v1554, %v1554
        %v1619 = vpack.c.bf16 %v1555, %v1555
        %v1620 = vpack.c.bf16 %v1556, %v1556
        %v1621 = vpack.c.bf16 %v1557, %v1557
        %v1622 = vpack.c.bf16 %v1558, %v1558
        %v1623 = vpack.c.bf16 %v1559, %v1559
        %v1624 = vpack.c.bf16 %v1560, %v1560
        %v1625 = vpack.c.bf16 %v1561, %v1561
        %v1626 = vpack.c.bf16 %v1562, %v1562
        %v1627 = vpack.c.bf16 %v1563, %v1563
        %v1628 = vpack.c.bf16 %v1564, %v1564
        %v1629 = vpack.c.bf16 %v1565, %v1565
        %v1630 = vpack.c.bf16 %v1566, %v1566
        %v1631 = vpack.c.bf16 %v1567, %v1567
        %v1632 = vpack.c.bf16 %v1568, %v1568
        %v1633 = vpack.c.bf16 %v1569, %v1569
        %v1634 = vpack.c.bf16 %v1570, %v1570
        %v1635 = vpack.c.bf16 %v1571, %v1571
        %v1636 = vpack.c.bf16 %v1572, %v1572
        %v1637 = vpack.c.bf16 %v1573, %v1573
        %v1638 = vpack.c.bf16 %v1574, %v1574
        %v1639 = vpack.c.bf16 %v1575, %v1575
        %1640 = vst [vmem:[%s265] sm:$0xf] %v1576
        %1641 = vst [vmem:[%s265 + $0x4] sm:$0xf] %v1577
        %1642 = vst [vmem:[%s265 + $0x8] sm:$0xf] %v1578
        %1643 = vst [vmem:[%s265 + $0xc] sm:$0xf] %v1579
        %1644 = vst [vmem:[%s265 + $0x10] sm:$0xf] %v1580
        %1645 = vst [vmem:[%s265 + $0x14] sm:$0xf] %v1581
        %1646 = vst [vmem:[%s265 + $0x18] sm:$0xf] %v1582
        %1647 = vst [vmem:[%s265 + $0x1c] sm:$0xf] %v1583
        %1648 = vst [vmem:[%s265 + $0x20] sm:$0xf] %v1584
        %1649 = vst [vmem:[%s265 + $0x24] sm:$0xf] %v1585
        %1650 = vst [vmem:[%s265 + $0x28] sm:$0xf] %v1586
        %1651 = vst [vmem:[%s265 + $0x2c] sm:$0xf] %v1587
        %1652 = vst [vmem:[%s265 + $0x30] sm:$0xf] %v1588
        %1653 = vst [vmem:[%s265 + $0x34] sm:$0xf] %v1589
        %1654 = vst [vmem:[%s265 + $0x38] sm:$0xf] %v1590
        %1655 = vst [vmem:[%s265 + $0x3c] sm:$0xf] %v1591
        %1656 = vst [vmem:[%s265 + $0x40] sm:$0xf] %v1592
        %1657 = vst [vmem:[%s265 + $0x44] sm:$0xf] %v1593
        %1658 = vst [vmem:[%s265 + $0x48] sm:$0xf] %v1594
        %1659 = vst [vmem:[%s265 + $0x4c] sm:$0xf] %v1595
        %1660 = vst [vmem:[%s265 + $0x50] sm:$0xf] %v1596
        %1661 = vst [vmem:[%s265 + $0x54] sm:$0xf] %v1597
        %1662 = vst [vmem:[%s265 + $0x58] sm:$0xf] %v1598
        %1663 = vst [vmem:[%s265 + $0x5c] sm:$0xf] %v1599
        %1664 = vst [vmem:[%s265 + $0x60] sm:$0xf] %v1600
        %1665 = vst [vmem:[%s265 + $0x64] sm:$0xf] %v1601
        %1666 = vst [vmem:[%s265 + $0x68] sm:$0xf] %v1602
        %1667 = vst [vmem:[%s265 + $0x6c] sm:$0xf] %v1603
        %1668 = vst [vmem:[%s265 + $0x70] sm:$0xf] %v1604
        %1669 = vst [vmem:[%s265 + $0x74] sm:$0xf] %v1605
        %1670 = vst [vmem:[%s265 + $0x78] sm:$0xf] %v1606
        %1671 = vst [vmem:[%s265 + $0x7c] sm:$0xf] %v1607
        %1672 = vst [vmem:[%s265 + $0x80] sm:$0xf] %v1608
        %1673 = vst [vmem:[%s265 + $0x84] sm:$0xf] %v1609
        %1674 = vst [vmem:[%s265 + $0x88] sm:$0xf] %v1610
        %1675 = vst [vmem:[%s265 + $0x8c] sm:$0xf] %v1611
        %1676 = vst [vmem:[%s265 + $0x90] sm:$0xf] %v1612
        %1677 = vst [vmem:[%s265 + $0x94] sm:$0xf] %v1613
        %1678 = vst [vmem:[%s265 + $0x98] sm:$0xf] %v1614
        %1679 = vst [vmem:[%s265 + $0x9c] sm:$0xf] %v1615
        %1680 = vst [vmem:[%s265 + $0xa0] sm:$0xf] %v1616
        %1681 = vst [vmem:[%s265 + $0xa4] sm:$0xf] %v1617
        %1682 = vst [vmem:[%s265 + $0xa8] sm:$0xf] %v1618
        %1683 = vst [vmem:[%s265 + $0xac] sm:$0xf] %v1619
        %1684 = vst [vmem:[%s265 + $0xb0] sm:$0xf] %v1620
        %1685 = vst [vmem:[%s265 + $0xb4] sm:$0xf] %v1621
        %1686 = vst [vmem:[%s265 + $0xb8] sm:$0xf] %v1622
        %1687 = vst [vmem:[%s265 + $0xbc] sm:$0xf] %v1623
        %1688 = vst [vmem:[%s265 + $0xc0] sm:$0xf] %v1624
        %1689 = vst [vmem:[%s265 + $0xc4] sm:$0xf] %v1625
        %1690 = vst [vmem:[%s265 + $0xc8] sm:$0xf] %v1626
        %1691 = vst [vmem:[%s265 + $0xcc] sm:$0xf] %v1627
        %1692 = vst [vmem:[%s265 + $0xd0] sm:$0xf] %v1628
        %1693 = vst [vmem:[%s265 + $0xd4] sm:$0xf] %v1629
        %1694 = vst [vmem:[%s265 + $0xd8] sm:$0xf] %v1630
        %1695 = vst [vmem:[%s265 + $0xdc] sm:$0xf] %v1631
        %1696 = vst [vmem:[%s265 + $0xe0] sm:$0xf] %v1632
        %1697 = vst [vmem:[%s265 + $0xe4] sm:$0xf] %v1633
        %1698 = vst [vmem:[%s265 + $0xe8] sm:$0xf] %v1634
        %1699 = vst [vmem:[%s265 + $0xec] sm:$0xf] %v1635
        %1700 = vst [vmem:[%s265 + $0xf0] sm:$0xf] %v1636
        %1701 = vst [vmem:[%s265 + $0xf4] sm:$0xf] %v1637
        %1702 = vst [vmem:[%s265 + $0xf8] sm:$0xf] %v1638
        %1703 = vst [vmem:[%s265 + $0xfc] sm:$0xf] %v1639
      $region40: #{_jit_stem.2} parent=31 // pred_fallthru
        _
      %s1704 = smul.u32 64, %s19
      %p1705 = scmp.lt.s32.totalorder %s1704, 255
      %s1706 = scalar_select %p1705, %s1704, 255
      %p1707 = scmp.lt.s32.totalorder %s20, 0
      %s1708 = scalar_select %p1707, %s20, 0
      %s1709 = sadd.s32 %s1708, %s1706
      %s1710 = smul.addr %s1709, 4
      %s1711 = scalar_lea.vmem %s3, %s1710
      // Predicated region
      $region41: #{_jit_stem.2} parent=31 // pred_check
        %p1712 = pneg %p135
      $region42: #{_jit_stem.2} parent=31 // pred_check_branch
        %1714 = sbr.rel (%p1712) target = $region44
      $region43: #{_jit_stem.2} parent=31 // pred_region
        %s1715 = smul.u32 64, %s19
      $region44: #{_jit_stem.2} parent=31 // pred_fallthru
        _
    $region32: #{_jit_stem.2} parent=5 // pred_fallthru
      _
    %p1716 = scmp.le.s32.totalorder 2, %s9
    // Predicated region
    $region45: #{_jit_stem.2} parent=5 // pred_check
      %p1717 = pneg %p1716
    $region46: #{_jit_stem.2} parent=5 // pred_check_branch
      %1719 = sbr.rel (%p1717) target = $region48
    $region47: #{_jit_stem.2} parent=5 // pred_region
      %s1720 = ssub.s32 %s9, 2
      // Predicated region
      $region49: #{_jit_stem.2} parent=47 // pred_check
        %p1721 = pneg %p141
      $region50: #{_jit_stem.2} parent=47 // pred_check_branch
        %1723 = sbr.rel (%p1721) target = $region52
      $region51: #{_jit_stem.2} parent=47 // pred_region
        %s1724 = smul.u32 64, %s22
        %p1725 = scmp.lt.s32.totalorder %s1724, 255
        %s1726 = scalar_select %p1725, %s1724, 255
        %p1727 = scmp.lt.s32.totalorder %s23, 0
        %s1728 = scalar_select %p1727, %s23, 0
        %s1729 = sadd.s32 %s1728, %s1726
        %s1730 = smul.addr %s1729, 4
        %s1731 = scalar_lea.vmem %s3, %s1730
      $region52: #{_jit_stem.2} parent=47 // pred_fallthru
        _
    $region48: #{_jit_stem.2} parent=5 // pred_fallthru
      _
  $region6: #{_jit_stem.2} parent=0 // loop_footer
    %s13 = sadd.s32 1, %s9
  $region7: #{_jit_stem.2} parent=0 // loop_footer_branch
    %8 = sbr.rel target = $region3
  $region8: #{_jit_stem.2} parent=0 // loop_exit
    _

// kernel: _jit_stem.3
$region0: #{_jit_stem.3}
  #allocation0 [shape = 'u32[]', space=smem, size = 0x4, offset = 0x4, fixed_abs, tag = 'smem constant byte address 0x4 - core index']
  #allocation1 [shape = 'u32[72,128]{1,0:T(1,128)}', space=vmem, size = 0x9000, scoped, tag = 'internal scratch']
  %s0 = inlined_call_operand.vmem [shape: bf16[32,1024], index: 0, kind: input, shape index: {}]
  %s1 = inlined_call_operand.vmem [shape: bf16[32,1024], index: 1, kind: input, shape index: {}]
  %s2 = inlined_call_operand.vmem [shape: bf16[32,1024], index: 2, kind: input, shape index: {}]
  %s3 = inlined_call_operand.vmem [shape: bf16[32,1024], index: 3, kind: input, shape index: {}]
  %s4 = inlined_call_operand.vmem [shape: bf16[32,1024], index: 4, kind: input, shape index: {}]
  %s5 = inlined_call_operand.vmem [shape: bf16[32,1024], index: 5, kind: input, shape index: {}]
  %s6 = inlined_call_operand.vmem [shape: bf16[32,1024], index: 6, kind: input, shape index: {}]
  %s7 = inlined_call_operand.vmem [shape: bf16[32,1024], index: 7, kind: input, shape index: {}]
  %s8 = inlined_call_operand.vmem [shape: bf16[32,1024], index: 8, kind: input, shape index: {}]
  %s9 = inlined_call_operand.vmem [shape: bf16[32,1024], index: 9, kind: output, shape index: {}]
  %s10 = sld [smem:[#allocation0]]
  $region46: #{_jit_stem.3} parent=0
    _
  %s12 = ssub.s32 1, %s10
  %s13 = scalar_select 0, %s12, %s10
  // Predicated region
  $region2: #{_jit_stem.3} parent=0 // pred_check
    _
  $region3: #{_jit_stem.3} parent=0 // pred_check_branch
    %15 = sbr.rel (0) target = $region5
  $region4: #{_jit_stem.3} parent=0 // pred_region
    _
  $region5: #{_jit_stem.3} parent=0 // pred_fallthru
    _
  // Predicated region
  $region6: #{_jit_stem.3} parent=0 // pred_check
    _
  $region7: #{_jit_stem.3} parent=0 // pred_check_branch
    %17 = sbr.rel (0) target = $region9
  $region8: #{_jit_stem.3} parent=0 // pred_region
    _
  $region9: #{_jit_stem.3} parent=0 // pred_fallthru
    _
  // Predicated region
  $region10: #{_jit_stem.3} parent=0 // pred_check
    _
  $region11: #{_jit_stem.3} parent=0 // pred_check_branch
    %19 = sbr.rel (0) target = $region13
  $region12: #{_jit_stem.3} parent=0 // pred_region
    _
  $region13: #{_jit_stem.3} parent=0 // pred_fallthru
    _
  // Predicated region
  $region14: #{_jit_stem.3} parent=0 // pred_check
    _
  $region15: #{_jit_stem.3} parent=0 // pred_check_branch
    %21 = sbr.rel (0) target = $region17
  $region16: #{_jit_stem.3} parent=0 // pred_region
    _
  $region17: #{_jit_stem.3} parent=0 // pred_fallthru
    _
  // Predicated region
  $region18: #{_jit_stem.3} parent=0 // pred_check
    _
  $region19: #{_jit_stem.3} parent=0 // pred_check_branch
    %23 = sbr.rel (0) target = $region21
  $region20: #{_jit_stem.3} parent=0 // pred_region
    _
  $region21: #{_jit_stem.3} parent=0 // pred_fallthru
    _
  // Predicated region
  $region22: #{_jit_stem.3} parent=0 // pred_check
    _
  $region23: #{_jit_stem.3} parent=0 // pred_check_branch
    %25 = sbr.rel (0) target = $region25
  $region24: #{_jit_stem.3} parent=0 // pred_region
    _
  $region25: #{_jit_stem.3} parent=0 // pred_fallthru
    _
  // Predicated region
  $region26: #{_jit_stem.3} parent=0 // pred_check
    _
  $region27: #{_jit_stem.3} parent=0 // pred_check_branch
    %27 = sbr.rel (0) target = $region29
  $region28: #{_jit_stem.3} parent=0 // pred_region
    _
  $region29: #{_jit_stem.3} parent=0 // pred_fallthru
    _
  // Predicated region
  $region30: #{_jit_stem.3} parent=0 // pred_check
    _
  $region31: #{_jit_stem.3} parent=0 // pred_check_branch
    %29 = sbr.rel (0) target = $region33
  $region32: #{_jit_stem.3} parent=0 // pred_region
    _
  $region33: #{_jit_stem.3} parent=0 // pred_fallthru
    _
  // Predicated region
  $region34: #{_jit_stem.3} parent=0 // pred_check
    _
  $region35: #{_jit_stem.3} parent=0 // pred_check_branch
    %31 = sbr.rel (0) target = $region37
  $region36: #{_jit_stem.3} parent=0 // pred_region
    _
  $region37: #{_jit_stem.3} parent=0 // pred_fallthru
    _
  %v32 = vld [vmem:[%s0] sm:$0xff]
  %v33 = vld [vmem:[%s0 + $0x8] sm:$0xff]
  %v34 = vld [vmem:[%s0 + $0x10] sm:$0xff]
  %v35 = vld [vmem:[%s0 + $0x18] sm:$0xff]
  %v36 = vld [vmem:[%s0 + $0x20] sm:$0xff]
  %v37 = vld [vmem:[%s0 + $0x28] sm:$0xff]
  %v38 = vld [vmem:[%s0 + $0x30] sm:$0xff]
  %v39 = vld [vmem:[%s0 + $0x38] sm:$0xff]
  %v40 = vld [vmem:[%s0 + $0x40] sm:$0xff]
  %v41 = vld [vmem:[%s0 + $0x48] sm:$0xff]
  %v42 = vld [vmem:[%s0 + $0x50] sm:$0xff]
  %v43 = vld [vmem:[%s0 + $0x58] sm:$0xff]
  %v44 = vld [vmem:[%s0 + $0x60] sm:$0xff]
  %v45 = vld [vmem:[%s0 + $0x68] sm:$0xff]
  %v46 = vld [vmem:[%s0 + $0x70] sm:$0xff]
  %v47 = vld [vmem:[%s0 + $0x78] sm:$0xff]
  %v48 = vld [vmem:[%s1] sm:$0xff]
  %v49 = vld [vmem:[%s1 + $0x8] sm:$0xff]
  %v50 = vld [vmem:[%s1 + $0x10] sm:$0xff]
  %v51 = vld [vmem:[%s1 + $0x18] sm:$0xff]
  %v52 = vld [vmem:[%s1 + $0x20] sm:$0xff]
  %v53 = vld [vmem:[%s1 + $0x28] sm:$0xff]
  %v54 = vld [vmem:[%s1 + $0x30] sm:$0xff]
  %v55 = vld [vmem:[%s1 + $0x38] sm:$0xff]
  %v56 = vld [vmem:[%s1 + $0x40] sm:$0xff]
  %v57 = vld [vmem:[%s1 + $0x48] sm:$0xff]
  %v58 = vld [vmem:[%s1 + $0x50] sm:$0xff]
  %v59 = vld [vmem:[%s1 + $0x58] sm:$0xff]
  %v60 = vld [vmem:[%s1 + $0x60] sm:$0xff]
  %v61 = vld [vmem:[%s1 + $0x68] sm:$0xff]
  %v62 = vld [vmem:[%s1 + $0x70] sm:$0xff]
  %v63 = vld [vmem:[%s1 + $0x78] sm:$0xff]
  %v64 = vunpack.c.l.bf16 %v32
  %v65 = vunpack.c.h.bf16 %v32
  %v66 = vunpack.c.l.bf16 %v33
  %v67 = vunpack.c.h.bf16 %v33
  %v68 = vunpack.c.l.bf16 %v34
  %v69 = vunpack.c.h.bf16 %v34
  %v70 = vunpack.c.l.bf16 %v35
  %v71 = vunpack.c.h.bf16 %v35
  %v72 = vunpack.c.l.bf16 %v36
  %v73 = vunpack.c.h.bf16 %v36
  %v74 = vunpack.c.l.bf16 %v37
  %v75 = vunpack.c.h.bf16 %v37
  %v76 = vunpack.c.l.bf16 %v38
  %v77 = vunpack.c.h.bf16 %v38
  %v78 = vunpack.c.l.bf16 %v39
  %v79 = vunpack.c.h.bf16 %v39
  %v80 = vunpack.c.l.bf16 %v40
  %v81 = vunpack.c.h.bf16 %v40
  %v82 = vunpack.c.l.bf16 %v41
  %v83 = vunpack.c.h.bf16 %v41
  %v84 = vunpack.c.l.bf16 %v42
  %v85 = vunpack.c.h.bf16 %v42
  %v86 = vunpack.c.l.bf16 %v43
  %v87 = vunpack.c.h.bf16 %v43
  %v88 = vunpack.c.l.bf16 %v44
  %v89 = vunpack.c.h.bf16 %v44
  %v90 = vunpack.c.l.bf16 %v45
  %v91 = vunpack.c.h.bf16 %v45
  %v92 = vunpack.c.l.bf16 %v46
  %v93 = vunpack.c.h.bf16 %v46
  %v94 = vunpack.c.l.bf16 %v47
  %v95 = vunpack.c.h.bf16 %v47
  %v96 = vunpack.c.l.bf16 %v48
  %v97 = vunpack.c.h.bf16 %v48
  %v98 = vunpack.c.l.bf16 %v49
  %v99 = vunpack.c.h.bf16 %v49
  %v100 = vunpack.c.l.bf16 %v50
  %v101 = vunpack.c.h.bf16 %v50
  %v102 = vunpack.c.l.bf16 %v51
  %v103 = vunpack.c.h.bf16 %v51
  %v104 = vunpack.c.l.bf16 %v52
  %v105 = vunpack.c.h.bf16 %v52
  %v106 = vunpack.c.l.bf16 %v53
  %v107 = vunpack.c.h.bf16 %v53
  %v108 = vunpack.c.l.bf16 %v54
  %v109 = vunpack.c.h.bf16 %v54
  %v110 = vunpack.c.l.bf16 %v55
  %v111 = vunpack.c.h.bf16 %v55
  %v112 = vunpack.c.l.bf16 %v56
  %v113 = vunpack.c.h.bf16 %v56
  %v114 = vunpack.c.l.bf16 %v57
  %v115 = vunpack.c.h.bf16 %v57
  %v116 = vunpack.c.l.bf16 %v58
  %v117 = vunpack.c.h.bf16 %v58
  %v118 = vunpack.c.l.bf16 %v59
  %v119 = vunpack.c.h.bf16 %v59
  %v120 = vunpack.c.l.bf16 %v60
  %v121 = vunpack.c.h.bf16 %v60
  %v122 = vunpack.c.l.bf16 %v61
  %v123 = vunpack.c.h.bf16 %v61
  %v124 = vunpack.c.l.bf16 %v62
  %v125 = vunpack.c.h.bf16 %v62
  %v126 = vunpack.c.l.bf16 %v63
  %v127 = vunpack.c.h.bf16 %v63
  %v128 = vmax.f32 %v64, %v96
  %v129 = vmax.f32 %v65, %v97
  %v130 = vmax.f32 %v66, %v98
  %v131 = vmax.f32 %v67, %v99
  %v132 = vmax.f32 %v68, %v100
  %v133 = vmax.f32 %v69, %v101
  %v134 = vmax.f32 %v70, %v102
  %v135 = vmax.f32 %v71, %v103
  %v136 = vmax.f32 %v72, %v104
  %v137 = vmax.f32 %v73, %v105
  %v138 = vmax.f32 %v74, %v106
  %v139 = vmax.f32 %v75, %v107
  %v140 = vmax.f32 %v76, %v108
  %v141 = vmax.f32 %v77, %v109
  %v142 = vmax.f32 %v78, %v110
  %v143 = vmax.f32 %v79, %v111
  %v144 = vmax.f32 %v80, %v112
  %v145 = vmax.f32 %v81, %v113
  %v146 = vmax.f32 %v82, %v114
  %v147 = vmax.f32 %v83, %v115
  %v148 = vmax.f32 %v84, %v116
  %v149 = vmax.f32 %v85, %v117
  %v150 = vmax.f32 %v86, %v118
  %v151 = vmax.f32 %v87, %v119
  %v152 = vmax.f32 %v88, %v120
  %v153 = vmax.f32 %v89, %v121
  %v154 = vmax.f32 %v90, %v122
  %v155 = vmax.f32 %v91, %v123
  %v156 = vmax.f32 %v92, %v124
  %v157 = vmax.f32 %v93, %v125
  %v158 = vmax.f32 %v94, %v126
  %v159 = vmax.f32 %v95, %v127
  %v160 = vpack.c.bf16 %v129, %v128
  %v161 = vpack.c.bf16 %v131, %v130
  %v162 = vpack.c.bf16 %v133, %v132
  %v163 = vpack.c.bf16 %v135, %v134
  %v164 = vpack.c.bf16 %v137, %v136
  %v165 = vpack.c.bf16 %v139, %v138
  %v166 = vpack.c.bf16 %v141, %v140
  %v167 = vpack.c.bf16 %v143, %v142
  %v168 = vpack.c.bf16 %v145, %v144
  %v169 = vpack.c.bf16 %v147, %v146
  %v170 = vpack.c.bf16 %v149, %v148
  %v171 = vpack.c.bf16 %v151, %v150
  %v172 = vpack.c.bf16 %v153, %v152
  %v173 = vpack.c.bf16 %v155, %v154
  %v174 = vpack.c.bf16 %v157, %v156
  %v175 = vpack.c.bf16 %v159, %v158
  %v176 = vld [vmem:[%s2] sm:$0xff]
  %v177 = vld [vmem:[%s2 + $0x8] sm:$0xff]
  %v178 = vld [vmem:[%s2 + $0x10] sm:$0xff]
  %v179 = vld [vmem:[%s2 + $0x18] sm:$0xff]
  %v180 = vld [vmem:[%s2 + $0x20] sm:$0xff]
  %v181 = vld [vmem:[%s2 + $0x28] sm:$0xff]
  %v182 = vld [vmem:[%s2 + $0x30] sm:$0xff]
  %v183 = vld [vmem:[%s2 + $0x38] sm:$0xff]
  %v184 = vld [vmem:[%s2 + $0x40] sm:$0xff]
  %v185 = vld [vmem:[%s2 + $0x48] sm:$0xff]
  %v186 = vld [vmem:[%s2 + $0x50] sm:$0xff]
  %v187 = vld [vmem:[%s2 + $0x58] sm:$0xff]
  %v188 = vld [vmem:[%s2 + $0x60] sm:$0xff]
  %v189 = vld [vmem:[%s2 + $0x68] sm:$0xff]
  %v190 = vld [vmem:[%s2 + $0x70] sm:$0xff]
  %v191 = vld [vmem:[%s2 + $0x78] sm:$0xff]
  %v192 = vunpack.c.l.bf16 %v160
  %v193 = vunpack.c.h.bf16 %v160
  %v194 = vunpack.c.l.bf16 %v161
  %v195 = vunpack.c.h.bf16 %v161
  %v196 = vunpack.c.l.bf16 %v162
  %v197 = vunpack.c.h.bf16 %v162
  %v198 = vunpack.c.l.bf16 %v163
  %v199 = vunpack.c.h.bf16 %v163
  %v200 = vunpack.c.l.bf16 %v164
  %v201 = vunpack.c.h.bf16 %v164
  %v202 = vunpack.c.l.bf16 %v165
  %v203 = vunpack.c.h.bf16 %v165
  %v204 = vunpack.c.l.bf16 %v166
  %v205 = vunpack.c.h.bf16 %v166
  %v206 = vunpack.c.l.bf16 %v167
  %v207 = vunpack.c.h.bf16 %v167
  %v208 = vunpack.c.l.bf16 %v168
  %v209 = vunpack.c.h.bf16 %v168
  %v210 = vunpack.c.l.bf16 %v169
  %v211 = vunpack.c.h.bf16 %v169
  %v212 = vunpack.c.l.bf16 %v170
  %v213 = vunpack.c.h.bf16 %v170
  %v214 = vunpack.c.l.bf16 %v171
  %v215 = vunpack.c.h.bf16 %v171
  %v216 = vunpack.c.l.bf16 %v172
  %v217 = vunpack.c.h.bf16 %v172
  %v218 = vunpack.c.l.bf16 %v173
  %v219 = vunpack.c.h.bf16 %v173
  %v220 = vunpack.c.l.bf16 %v174
  %v221 = vunpack.c.h.bf16 %v174
  %v222 = vunpack.c.l.bf16 %v175
  %v223 = vunpack.c.h.bf16 %v175
  %v224 = vunpack.c.l.bf16 %v176
  %v225 = vunpack.c.h.bf16 %v176
  %v226 = vunpack.c.l.bf16 %v177
  %v227 = vunpack.c.h.bf16 %v177
  %v228 = vunpack.c.l.bf16 %v178
  %v229 = vunpack.c.h.bf16 %v178
  %v230 = vunpack.c.l.bf16 %v179
  %v231 = vunpack.c.h.bf16 %v179
  %v232 = vunpack.c.l.bf16 %v180
  %v233 = vunpack.c.h.bf16 %v180
  %v234 = vunpack.c.l.bf16 %v181
  %v235 = vunpack.c.h.bf16 %v181
  %v236 = vunpack.c.l.bf16 %v182
  %v237 = vunpack.c.h.bf16 %v182
  %v238 = vunpack.c.l.bf16 %v183
  %v239 = vunpack.c.h.bf16 %v183
  %v240 = vunpack.c.l.bf16 %v184
  %v241 = vunpack.c.h.bf16 %v184
  %v242 = vunpack.c.l.bf16 %v185
  %v243 = vunpack.c.h.bf16 %v185
  %v244 = vunpack.c.l.bf16 %v186
  %v245 = vunpack.c.h.bf16 %v186
  %v246 = vunpack.c.l.bf16 %v187
  %v247 = vunpack.c.h.bf16 %v187
  %v248 = vunpack.c.l.bf16 %v188
  %v249 = vunpack.c.h.bf16 %v188
  %v250 = vunpack.c.l.bf16 %v189
  %v251 = vunpack.c.h.bf16 %v189
  %v252 = vunpack.c.l.bf16 %v190
  %v253 = vunpack.c.h.bf16 %v190
  %v254 = vunpack.c.l.bf16 %v191
  %v255 = vunpack.c.h.bf16 %v191
  %v256 = vmax.f32 %v192, %v224
  %v257 = vmax.f32 %v193, %v225
  %v258 = vmax.f32 %v194, %v226
  %v259 = vmax.f32 %v195, %v227
  %v260 = vmax.f32 %v196, %v228
  %v261 = vmax.f32 %v197, %v229
  %v262 = vmax.f32 %v198, %v230
  %v263 = vmax.f32 %v199, %v231
  %v264 = vmax.f32 %v200, %v232
  %v265 = vmax.f32 %v201, %v233
  %v266 = vmax.f32 %v202, %v234
  %v267 = vmax.f32 %v203, %v235
  %v268 = vmax.f32 %v204, %v236
  %v269 = vmax.f32 %v205, %v237
  %v270 = vmax.f32 %v206, %v238
  %v271 = vmax.f32 %v207, %v239
  %v272 = vmax.f32 %v208, %v240
  %v273 = vmax.f32 %v209, %v241
  %v274 = vmax.f32 %v210, %v242
  %v275 = vmax.f32 %v211, %v243
  %v276 = vmax.f32 %v212, %v244
  %v277 = vmax.f32 %v213, %v245
  %v278 = vmax.f32 %v214, %v246
  %v279 = vmax.f32 %v215, %v247
  %v280 = vmax.f32 %v216, %v248
  %v281 = vmax.f32 %v217, %v249
  %v282 = vmax.f32 %v218, %v250
  %v283 = vmax.f32 %v219, %v251
  %v284 = vmax.f32 %v220, %v252
  %v285 = vmax.f32 %v221, %v253
  %v286 = vmax.f32 %v222, %v254
  %v287 = vmax.f32 %v223, %v255
  %v288 = vpack.c.bf16 %v257, %v256
  %v289 = vpack.c.bf16 %v259, %v258
  %v290 = vpack.c.bf16 %v261, %v260
  %v291 = vpack.c.bf16 %v263, %v262
  %v292 = vpack.c.bf16 %v265, %v264
  %v293 = vpack.c.bf16 %v267, %v266
  %v294 = vpack.c.bf16 %v269, %v268
  %v295 = vpack.c.bf16 %v271, %v270
  %v296 = vpack.c.bf16 %v273, %v272
  %v297 = vpack.c.bf16 %v275, %v274
  %v298 = vpack.c.bf16 %v277, %v276
  %v299 = vpack.c.bf16 %v279, %v278
  %v300 = vpack.c.bf16 %v281, %v280
  %v301 = vpack.c.bf16 %v283, %v282
  %v302 = vpack.c.bf16 %v285, %v284
  %v303 = vpack.c.bf16 %v287, %v286
  %v304 = vld [vmem:[%s3] sm:$0xff]
  %v305 = vld [vmem:[%s3 + $0x8] sm:$0xff]
  %v306 = vld [vmem:[%s3 + $0x10] sm:$0xff]
  %v307 = vld [vmem:[%s3 + $0x18] sm:$0xff]
  %v308 = vld [vmem:[%s3 + $0x20] sm:$0xff]
  %v309 = vld [vmem:[%s3 + $0x28] sm:$0xff]
  %v310 = vld [vmem:[%s3 + $0x30] sm:$0xff]
  %v311 = vld [vmem:[%s3 + $0x38] sm:$0xff]
  %v312 = vld [vmem:[%s3 + $0x40] sm:$0xff]
  %v313 = vld [vmem:[%s3 + $0x48] sm:$0xff]
  %v314 = vld [vmem:[%s3 + $0x50] sm:$0xff]
  %v315 = vld [vmem:[%s3 + $0x58] sm:$0xff]
  %v316 = vld [vmem:[%s3 + $0x60] sm:$0xff]
  %v317 = vld [vmem:[%s3 + $0x68] sm:$0xff]
  %v318 = vld [vmem:[%s3 + $0x70] sm:$0xff]
  %v319 = vld [vmem:[%s3 + $0x78] sm:$0xff]
  %v320 = vunpack.c.l.bf16 %v288
  %v321 = vunpack.c.h.bf16 %v288
  %v322 = vunpack.c.l.bf16 %v289
  %v323 = vunpack.c.h.bf16 %v289
  %v324 = vunpack.c.l.bf16 %v290
  %v325 = vunpack.c.h.bf16 %v290
  %v326 = vunpack.c.l.bf16 %v291
  %v327 = vunpack.c.h.bf16 %v291
  %v328 = vunpack.c.l.bf16 %v292
  %v329 = vunpack.c.h.bf16 %v292
  %v330 = vunpack.c.l.bf16 %v293
  %v331 = vunpack.c.h.bf16 %v293
  %v332 = vunpack.c.l.bf16 %v294
  %v333 = vunpack.c.h.bf16 %v294
  %v334 = vunpack.c.l.bf16 %v295
  %v335 = vunpack.c.h.bf16 %v295
  %v336 = vunpack.c.l.bf16 %v296
  %v337 = vunpack.c.h.bf16 %v296
  %v338 = vunpack.c.l.bf16 %v297
  %v339 = vunpack.c.h.bf16 %v297
  %v340 = vunpack.c.l.bf16 %v298
  %v341 = vunpack.c.h.bf16 %v298
  %v342 = vunpack.c.l.bf16 %v299
  %v343 = vunpack.c.h.bf16 %v299
  %v344 = vunpack.c.l.bf16 %v300
  %v345 = vunpack.c.h.bf16 %v300
  %v346 = vunpack.c.l.bf16 %v301
  %v347 = vunpack.c.h.bf16 %v301
  %v348 = vunpack.c.l.bf16 %v302
  %v349 = vunpack.c.h.bf16 %v302
  %v350 = vunpack.c.l.bf16 %v303
  %v351 = vunpack.c.h.bf16 %v303
  %v352 = vunpack.c.l.bf16 %v304
  %v353 = vunpack.c.h.bf16 %v304
  %v354 = vunpack.c.l.bf16 %v305
  %v355 = vunpack.c.h.bf16 %v305
  %v356 = vunpack.c.l.bf16 %v306
  %v357 = vunpack.c.h.bf16 %v306
  %v358 = vunpack.c.l.bf16 %v307
  %v359 = vunpack.c.h.bf16 %v307
  %v360 = vunpack.c.l.bf16 %v308
  %v361 = vunpack.c.h.bf16 %v308
  %v362 = vunpack.c.l.bf16 %v309
  %v363 = vunpack.c.h.bf16 %v309
  %v364 = vunpack.c.l.bf16 %v310
  %v365 = vunpack.c.h.bf16 %v310
  %v366 = vunpack.c.l.bf16 %v311
  %v367 = vunpack.c.h.bf16 %v311
  %v368 = vunpack.c.l.bf16 %v312
  %v369 = vunpack.c.h.bf16 %v312
  %v370 = vunpack.c.l.bf16 %v313
  %v371 = vunpack.c.h.bf16 %v313
  %v372 = vunpack.c.l.bf16 %v314
  %v373 = vunpack.c.h.bf16 %v314
  %v374 = vunpack.c.l.bf16 %v315
  %v375 = vunpack.c.h.bf16 %v315
  %v376 = vunpack.c.l.bf16 %v316
  %v377 = vunpack.c.h.bf16 %v316
  %v378 = vunpack.c.l.bf16 %v317
  %v379 = vunpack.c.h.bf16 %v317
  %v380 = vunpack.c.l.bf16 %v318
  %v381 = vunpack.c.h.bf16 %v318
  %v382 = vunpack.c.l.bf16 %v319
  %v383 = vunpack.c.h.bf16 %v319
  %v384 = vmax.f32 %v320, %v352
  %v385 = vmax.f32 %v321, %v353
  %v386 = vmax.f32 %v322, %v354
  %v387 = vmax.f32 %v323, %v355
  %v388 = vmax.f32 %v324, %v356
  %v389 = vmax.f32 %v325, %v357
  %v390 = vmax.f32 %v326, %v358
  %v391 = vmax.f32 %v327, %v359
  %v392 = vmax.f32 %v328, %v360
  %v393 = vmax.f32 %v329, %v361
  %v394 = vmax.f32 %v330, %v362
  %v395 = vmax.f32 %v331, %v363
  %v396 = vmax.f32 %v332, %v364
  %v397 = vmax.f32 %v333, %v365
  %v398 = vmax.f32 %v334, %v366
  %v399 = vmax.f32 %v335, %v367
  %v400 = vmax.f32 %v336, %v368
  %v401 = vmax.f32 %v337, %v369
  %v402 = vmax.f32 %v338, %v370
  %v403 = vmax.f32 %v339, %v371
  %v404 = vmax.f32 %v340, %v372
  %v405 = vmax.f32 %v341, %v373
  %v406 = vmax.f32 %v342, %v374
  %v407 = vmax.f32 %v343, %v375
  %v408 = vmax.f32 %v344, %v376
  %v409 = vmax.f32 %v345, %v377
  %v410 = vmax.f32 %v346, %v378
  %v411 = vmax.f32 %v347, %v379
  %v412 = vmax.f32 %v348, %v380
  %v413 = vmax.f32 %v349, %v381
  %v414 = vmax.f32 %v350, %v382
  %v415 = vmax.f32 %v351, %v383
  %v416 = vpack.c.bf16 %v385, %v384
  %v417 = vpack.c.bf16 %v387, %v386
  %v418 = vpack.c.bf16 %v389, %v388
  %v419 = vpack.c.bf16 %v391, %v390
  %v420 = vpack.c.bf16 %v393, %v392
  %v421 = vpack.c.bf16 %v395, %v394
  %v422 = vpack.c.bf16 %v397, %v396
  %v423 = vpack.c.bf16 %v399, %v398
  %v424 = vpack.c.bf16 %v401, %v400
  %v425 = vpack.c.bf16 %v403, %v402
  %v426 = vpack.c.bf16 %v405, %v404
  %v427 = vpack.c.bf16 %v407, %v406
  %v428 = vpack.c.bf16 %v409, %v408
  %v429 = vpack.c.bf16 %v411, %v410
  %v430 = vpack.c.bf16 %v413, %v412
  %v431 = vpack.c.bf16 %v415, %v414
  %v432 = vld [vmem:[%s4] sm:$0xff]
  %v433 = vld [vmem:[%s4 + $0x8] sm:$0xff]
  %v434 = vld [vmem:[%s4 + $0x10] sm:$0xff]
  %v435 = vld [vmem:[%s4 + $0x18] sm:$0xff]
  %v436 = vld [vmem:[%s4 + $0x20] sm:$0xff]
  %v437 = vld [vmem:[%s4 + $0x28] sm:$0xff]
  %v438 = vld [vmem:[%s4 + $0x30] sm:$0xff]
  %v439 = vld [vmem:[%s4 + $0x38] sm:$0xff]
  %v440 = vld [vmem:[%s4 + $0x40] sm:$0xff]
  %v441 = vld [vmem:[%s4 + $0x48] sm:$0xff]
  %v442 = vld [vmem:[%s4 + $0x50] sm:$0xff]
  %v443 = vld [vmem:[%s4 + $0x58] sm:$0xff]
  %v444 = vld [vmem:[%s4 + $0x60] sm:$0xff]
  %v445 = vld [vmem:[%s4 + $0x68] sm:$0xff]
  %v446 = vld [vmem:[%s4 + $0x70] sm:$0xff]
  %v447 = vld [vmem:[%s4 + $0x78] sm:$0xff]
  %v448 = vunpack.c.l.bf16 %v416
  %v449 = vunpack.c.h.bf16 %v416
  %v450 = vunpack.c.l.bf16 %v417
  %v451 = vunpack.c.h.bf16 %v417
  %v452 = vunpack.c.l.bf16 %v418
  %v453 = vunpack.c.h.bf16 %v418
  %v454 = vunpack.c.l.bf16 %v419
  %v455 = vunpack.c.h.bf16 %v419
  %v456 = vunpack.c.l.bf16 %v420
  %v457 = vunpack.c.h.bf16 %v420
  %v458 = vunpack.c.l.bf16 %v421
  %v459 = vunpack.c.h.bf16 %v421
  %v460 = vunpack.c.l.bf16 %v422
  %v461 = vunpack.c.h.bf16 %v422
  %v462 = vunpack.c.l.bf16 %v423
  %v463 = vunpack.c.h.bf16 %v423
  %v464 = vunpack.c.l.bf16 %v424
  %v465 = vunpack.c.h.bf16 %v424
  %v466 = vunpack.c.l.bf16 %v425
  %v467 = vunpack.c.h.bf16 %v425
  %v468 = vunpack.c.l.bf16 %v426
  %v469 = vunpack.c.h.bf16 %v426
  %v470 = vunpack.c.l.bf16 %v427
  %v471 = vunpack.c.h.bf16 %v427
  %v472 = vunpack.c.l.bf16 %v428
  %v473 = vunpack.c.h.bf16 %v428
  %v474 = vunpack.c.l.bf16 %v429
  %v475 = vunpack.c.h.bf16 %v429
  %v476 = vunpack.c.l.bf16 %v430
  %v477 = vunpack.c.h.bf16 %v430
  %v478 = vunpack.c.l.bf16 %v431
  %v479 = vunpack.c.h.bf16 %v431
  %v480 = vunpack.c.l.bf16 %v432
  %v481 = vunpack.c.h.bf16 %v432
  %v482 = vunpack.c.l.bf16 %v433
  %v483 = vunpack.c.h.bf16 %v433
  %v484 = vunpack.c.l.bf16 %v434
  %v485 = vunpack.c.h.bf16 %v434
  %v486 = vunpack.c.l.bf16 %v435
  %v487 = vunpack.c.h.bf16 %v435
  %v488 = vunpack.c.l.bf16 %v436
  %v489 = vunpack.c.h.bf16 %v436
  %v490 = vunpack.c.l.bf16 %v437
  %v491 = vunpack.c.h.bf16 %v437
  %v492 = vunpack.c.l.bf16 %v438
  %v493 = vunpack.c.h.bf16 %v438
  %v494 = vunpack.c.l.bf16 %v439
  %v495 = vunpack.c.h.bf16 %v439
  %v496 = vunpack.c.l.bf16 %v440
  %v497 = vunpack.c.h.bf16 %v440
  %v498 = vunpack.c.l.bf16 %v441
  %v499 = vunpack.c.h.bf16 %v441
  %v500 = vunpack.c.l.bf16 %v442
  %v501 = vunpack.c.h.bf16 %v442
  %v502 = vunpack.c.l.bf16 %v443
  %v503 = vunpack.c.h.bf16 %v443
  %v504 = vunpack.c.l.bf16 %v444
  %v505 = vunpack.c.h.bf16 %v444
  %v506 = vunpack.c.l.bf16 %v445
  %v507 = vunpack.c.h.bf16 %v445
  %v508 = vunpack.c.l.bf16 %v446
  %v509 = vunpack.c.h.bf16 %v446
  %v510 = vunpack.c.l.bf16 %v447
  %v511 = vunpack.c.h.bf16 %v447
  %v512 = vmax.f32 %v448, %v480
  %v513 = vmax.f32 %v449, %v481
  %v514 = vmax.f32 %v450, %v482
  %v515 = vmax.f32 %v451, %v483
  %v516 = vmax.f32 %v452, %v484
  %v517 = vmax.f32 %v453, %v485
  %v518 = vmax.f32 %v454, %v486
  %v519 = vmax.f32 %v455, %v487
  %v520 = vmax.f32 %v456, %v488
  %v521 = vmax.f32 %v457, %v489
  %v522 = vmax.f32 %v458, %v490
  %v523 = vmax.f32 %v459, %v491
  %v524 = vmax.f32 %v460, %v492
  %v525 = vmax.f32 %v461, %v493
  %v526 = vmax.f32 %v462, %v494
  %v527 = vmax.f32 %v463, %v495
  %v528 = vmax.f32 %v464, %v496
  %v529 = vmax.f32 %v465, %v497
  %v530 = vmax.f32 %v466, %v498
  %v531 = vmax.f32 %v467, %v499
  %v532 = vmax.f32 %v468, %v500
  %v533 = vmax.f32 %v469, %v501
  %v534 = vmax.f32 %v470, %v502
  %v535 = vmax.f32 %v471, %v503
  %v536 = vmax.f32 %v472, %v504
  %v537 = vmax.f32 %v473, %v505
  %v538 = vmax.f32 %v474, %v506
  %v539 = vmax.f32 %v475, %v507
  %v540 = vmax.f32 %v476, %v508
  %v541 = vmax.f32 %v477, %v509
  %v542 = vmax.f32 %v478, %v510
  %v543 = vmax.f32 %v479, %v511
  %v544 = vpack.c.bf16 %v513, %v512
  %v545 = vpack.c.bf16 %v515, %v514
  %v546 = vpack.c.bf16 %v517, %v516
  %v547 = vpack.c.bf16 %v519, %v518
  %v548 = vpack.c.bf16 %v521, %v520
  %v549 = vpack.c.bf16 %v523, %v522
  %v550 = vpack.c.bf16 %v525, %v524
  %v551 = vpack.c.bf16 %v527, %v526
  %v552 = vpack.c.bf16 %v529, %v528
  %v553 = vpack.c.bf16 %v531, %v530
  %v554 = vpack.c.bf16 %v533, %v532
  %v555 = vpack.c.bf16 %v535, %v534
  %v556 = vpack.c.bf16 %v537, %v536
  %v557 = vpack.c.bf16 %v539, %v538
  %v558 = vpack.c.bf16 %v541, %v540
  %v559 = vpack.c.bf16 %v543, %v542
  %v560 = vld [vmem:[%s5] sm:$0xff]
  %v561 = vld [vmem:[%s5 + $0x8] sm:$0xff]
  %v562 = vld [vmem:[%s5 + $0x10] sm:$0xff]
  %v563 = vld [vmem:[%s5 + $0x18] sm:$0xff]
  %v564 = vld [vmem:[%s5 + $0x20] sm:$0xff]
  %v565 = vld [vmem:[%s5 + $0x28] sm:$0xff]
  %v566 = vld [vmem:[%s5 + $0x30] sm:$0xff]
  %v567 = vld [vmem:[%s5 + $0x38] sm:$0xff]
  %v568 = vld [vmem:[%s5 + $0x40] sm:$0xff]
  %v569 = vld [vmem:[%s5 + $0x48] sm:$0xff]
  %v570 = vld [vmem:[%s5 + $0x50] sm:$0xff]
  %v571 = vld [vmem:[%s5 + $0x58] sm:$0xff]
  %v572 = vld [vmem:[%s5 + $0x60] sm:$0xff]
  %v573 = vld [vmem:[%s5 + $0x68] sm:$0xff]
  %v574 = vld [vmem:[%s5 + $0x70] sm:$0xff]
  %v575 = vld [vmem:[%s5 + $0x78] sm:$0xff]
  %v576 = vunpack.c.l.bf16 %v544
  %v577 = vunpack.c.h.bf16 %v544
  %v578 = vunpack.c.l.bf16 %v545
  %v579 = vunpack.c.h.bf16 %v545
  %v580 = vunpack.c.l.bf16 %v546
  %v581 = vunpack.c.h.bf16 %v546
  %v582 = vunpack.c.l.bf16 %v547
  %v583 = vunpack.c.h.bf16 %v547
  %v584 = vunpack.c.l.bf16 %v548
  %v585 = vunpack.c.h.bf16 %v548
  %v586 = vunpack.c.l.bf16 %v549
  %v587 = vunpack.c.h.bf16 %v549
  %v588 = vunpack.c.l.bf16 %v550
  %v589 = vunpack.c.h.bf16 %v550
  %v590 = vunpack.c.l.bf16 %v551
  %v591 = vunpack.c.h.bf16 %v551
  %v592 = vunpack.c.l.bf16 %v552
  %v593 = vunpack.c.h.bf16 %v552
  %v594 = vunpack.c.l.bf16 %v553
  %v595 = vunpack.c.h.bf16 %v553
  %v596 = vunpack.c.l.bf16 %v554
  %v597 = vunpack.c.h.bf16 %v554
  %v598 = vunpack.c.l.bf16 %v555
  %v599 = vunpack.c.h.bf16 %v555
  %v600 = vunpack.c.l.bf16 %v556
  %v601 = vunpack.c.h.bf16 %v556
  %v602 = vunpack.c.l.bf16 %v557
  %v603 = vunpack.c.h.bf16 %v557
  %v604 = vunpack.c.l.bf16 %v558
  %v605 = vunpack.c.h.bf16 %v558
  %v606 = vunpack.c.l.bf16 %v559
  %v607 = vunpack.c.h.bf16 %v559
  %v608 = vunpack.c.l.bf16 %v560
  %v609 = vunpack.c.h.bf16 %v560
  %v610 = vunpack.c.l.bf16 %v561
  %v611 = vunpack.c.h.bf16 %v561
  %v612 = vunpack.c.l.bf16 %v562
  %v613 = vunpack.c.h.bf16 %v562
  %v614 = vunpack.c.l.bf16 %v563
  %v615 = vunpack.c.h.bf16 %v563
  %v616 = vunpack.c.l.bf16 %v564
  %v617 = vunpack.c.h.bf16 %v564
  %v618 = vunpack.c.l.bf16 %v565
  %v619 = vunpack.c.h.bf16 %v565
  %v620 = vunpack.c.l.bf16 %v566
  %v621 = vunpack.c.h.bf16 %v566
  %v622 = vunpack.c.l.bf16 %v567
  %v623 = vunpack.c.h.bf16 %v567
  %v624 = vunpack.c.l.bf16 %v568
  %v625 = vunpack.c.h.bf16 %v568
  %v626 = vunpack.c.l.bf16 %v569
  %v627 = vunpack.c.h.bf16 %v569
  %v628 = vunpack.c.l.bf16 %v570
  %v629 = vunpack.c.h.bf16 %v570
  %v630 = vunpack.c.l.bf16 %v571
  %v631 = vunpack.c.h.bf16 %v571
  %v632 = vunpack.c.l.bf16 %v572
  %v633 = vunpack.c.h.bf16 %v572
  %v634 = vunpack.c.l.bf16 %v573
  %v635 = vunpack.c.h.bf16 %v573
  %v636 = vunpack.c.l.bf16 %v574
  %v637 = vunpack.c.h.bf16 %v574
  %v638 = vunpack.c.l.bf16 %v575
  %v639 = vunpack.c.h.bf16 %v575
  %v640 = vmax.f32 %v576, %v608
  %v641 = vmax.f32 %v577, %v609
  %v642 = vmax.f32 %v578, %v610
  %v643 = vmax.f32 %v579, %v611
  %v644 = vmax.f32 %v580, %v612
  %v645 = vmax.f32 %v581, %v613
  %v646 = vmax.f32 %v582, %v614
  %v647 = vmax.f32 %v583, %v615
  %v648 = vmax.f32 %v584, %v616
  %v649 = vmax.f32 %v585, %v617
  %v650 = vmax.f32 %v586, %v618
  %v651 = vmax.f32 %v587, %v619
  %v652 = vmax.f32 %v588, %v620
  %v653 = vmax.f32 %v589, %v621
  %v654 = vmax.f32 %v590, %v622
  %v655 = vmax.f32 %v591, %v623
  %v656 = vmax.f32 %v592, %v624
  %v657 = vmax.f32 %v593, %v625
  %v658 = vmax.f32 %v594, %v626
  %v659 = vmax.f32 %v595, %v627
  %v660 = vmax.f32 %v596, %v628
  %v661 = vmax.f32 %v597, %v629
  %v662 = vmax.f32 %v598, %v630
  %v663 = vmax.f32 %v599, %v631
  %v664 = vmax.f32 %v600, %v632
  %v665 = vmax.f32 %v601, %v633
  %v666 = vmax.f32 %v602, %v634
  %v667 = vmax.f32 %v603, %v635
  %v668 = vmax.f32 %v604, %v636
  %v669 = vmax.f32 %v605, %v637
  %v670 = vmax.f32 %v606, %v638
  %v671 = vmax.f32 %v607, %v639
  %v672 = vpack.c.bf16 %v641, %v640
  %v673 = vpack.c.bf16 %v643, %v642
  %v674 = vpack.c.bf16 %v645, %v644
  %v675 = vpack.c.bf16 %v647, %v646
  %v676 = vpack.c.bf16 %v649, %v648
  %v677 = vpack.c.bf16 %v651, %v650
  %v678 = vpack.c.bf16 %v653, %v652
  %v679 = vpack.c.bf16 %v655, %v654
  %v680 = vpack.c.bf16 %v657, %v656
  %v681 = vpack.c.bf16 %v659, %v658
  %v682 = vpack.c.bf16 %v661, %v660
  %v683 = vpack.c.bf16 %v663, %v662
  %v684 = vpack.c.bf16 %v665, %v664
  %v685 = vpack.c.bf16 %v667, %v666
  %v686 = vpack.c.bf16 %v669, %v668
  %v687 = vpack.c.bf16 %v671, %v670
  %v688 = vld [vmem:[%s6] sm:$0xff]
  %v689 = vld [vmem:[%s6 + $0x8] sm:$0xff]
  %v690 = vld [vmem:[%s6 + $0x10] sm:$0xff]
  %v691 = vld [vmem:[%s6 + $0x18] sm:$0xff]
  %v692 = vld [vmem:[%s6 + $0x20] sm:$0xff]
  %v693 = vld [vmem:[%s6 + $0x28] sm:$0xff]
  %v694 = vld [vmem:[%s6 + $0x30] sm:$0xff]
  %v695 = vld [vmem:[%s6 + $0x38] sm:$0xff]
  %v696 = vld [vmem:[%s6 + $0x40] sm:$0xff]
  %v697 = vld [vmem:[%s6 + $0x48] sm:$0xff]
  %v698 = vld [vmem:[%s6 + $0x50] sm:$0xff]
  %v699 = vld [vmem:[%s6 + $0x58] sm:$0xff]
  %v700 = vld [vmem:[%s6 + $0x60] sm:$0xff]
  %v701 = vld [vmem:[%s6 + $0x68] sm:$0xff]
  %v702 = vld [vmem:[%s6 + $0x70] sm:$0xff]
  %v703 = vld [vmem:[%s6 + $0x78] sm:$0xff]
  %v704 = vunpack.c.l.bf16 %v672
  %v705 = vunpack.c.h.bf16 %v672
  %v706 = vunpack.c.l.bf16 %v673
  %v707 = vunpack.c.h.bf16 %v673
  %v708 = vunpack.c.l.bf16 %v674
  %v709 = vunpack.c.h.bf16 %v674
  %v710 = vunpack.c.l.bf16 %v675
  %v711 = vunpack.c.h.bf16 %v675
  %v712 = vunpack.c.l.bf16 %v676
  %v713 = vunpack.c.h.bf16 %v676
  %v714 = vunpack.c.l.bf16 %v677
  %v715 = vunpack.c.h.bf16 %v677
  %v716 = vunpack.c.l.bf16 %v678
  %v717 = vunpack.c.h.bf16 %v678
  %v718 = vunpack.c.l.bf16 %v679
  %v719 = vunpack.c.h.bf16 %v679
  %v720 = vunpack.c.l.bf16 %v680
  %v721 = vunpack.c.h.bf16 %v680
  %v722 = vunpack.c.l.bf16 %v681
  %v723 = vunpack.c.h.bf16 %v681
  %v724 = vunpack.c.l.bf16 %v682
  %v725 = vunpack.c.h.bf16 %v682
  %v726 = vunpack.c.l.bf16 %v683
  %v727 = vunpack.c.h.bf16 %v683
  %v728 = vunpack.c.l.bf16 %v684
  %v729 = vunpack.c.h.bf16 %v684
  %v730 = vunpack.c.l.bf16 %v685
  %v731 = vunpack.c.h.bf16 %v685
  %v732 = vunpack.c.l.bf16 %v686
  %v733 = vunpack.c.h.bf16 %v686
  %v734 = vunpack.c.l.bf16 %v687
  %v735 = vunpack.c.h.bf16 %v687
  %v736 = vunpack.c.l.bf16 %v688
  %v737 = vunpack.c.h.bf16 %v688
  %v738 = vunpack.c.l.bf16 %v689
  %v739 = vunpack.c.h.bf16 %v689
  %v740 = vunpack.c.l.bf16 %v690
  %v741 = vunpack.c.h.bf16 %v690
  %v742 = vunpack.c.l.bf16 %v691
  %v743 = vunpack.c.h.bf16 %v691
  %v744 = vunpack.c.l.bf16 %v692
  %v745 = vunpack.c.h.bf16 %v692
  %v746 = vunpack.c.l.bf16 %v693
  %v747 = vunpack.c.h.bf16 %v693
  %v748 = vunpack.c.l.bf16 %v694
  %v749 = vunpack.c.h.bf16 %v694
  %v750 = vunpack.c.l.bf16 %v695
  %v751 = vunpack.c.h.bf16 %v695
  %v752 = vunpack.c.l.bf16 %v696
  %v753 = vunpack.c.h.bf16 %v696
  %v754 = vunpack.c.l.bf16 %v697
  %v755 = vunpack.c.h.bf16 %v697
  %v756 = vunpack.c.l.bf16 %v698
  %v757 = vunpack.c.h.bf16 %v698
  %v758 = vunpack.c.l.bf16 %v699
  %v759 = vunpack.c.h.bf16 %v699
  %v760 = vunpack.c.l.bf16 %v700
  %v761 = vunpack.c.h.bf16 %v700
  %v762 = vunpack.c.l.bf16 %v701
  %v763 = vunpack.c.h.bf16 %v701
  %v764 = vunpack.c.l.bf16 %v702
  %v765 = vunpack.c.h.bf16 %v702
  %v766 = vunpack.c.l.bf16 %v703
  %v767 = vunpack.c.h.bf16 %v703
  %v768 = vmax.f32 %v704, %v736
  %v769 = vmax.f32 %v705, %v737
  %v770 = vmax.f32 %v706, %v738
  %v771 = vmax.f32 %v707, %v739
  %v772 = vmax.f32 %v708, %v740
  %v773 = vmax.f32 %v709, %v741
  %v774 = vmax.f32 %v710, %v742
  %v775 = vmax.f32 %v711, %v743
  %v776 = vmax.f32 %v712, %v744
  %v777 = vmax.f32 %v713, %v745
  %v778 = vmax.f32 %v714, %v746
  %v779 = vmax.f32 %v715, %v747
  %v780 = vmax.f32 %v716, %v748
  %v781 = vmax.f32 %v717, %v749
  %v782 = vmax.f32 %v718, %v750
  %v783 = vmax.f32 %v719, %v751
  %v784 = vmax.f32 %v720, %v752
  %v785 = vmax.f32 %v721, %v753
  %v786 = vmax.f32 %v722, %v754
  %v787 = vmax.f32 %v723, %v755
  %v788 = vmax.f32 %v724, %v756
  %v789 = vmax.f32 %v725, %v757
  %v790 = vmax.f32 %v726, %v758
  %v791 = vmax.f32 %v727, %v759
  %v792 = vmax.f32 %v728, %v760
  %v793 = vmax.f32 %v729, %v761
  %v794 = vmax.f32 %v730, %v762
  %v795 = vmax.f32 %v731, %v763
  %v796 = vmax.f32 %v732, %v764
  %v797 = vmax.f32 %v733, %v765
  %v798 = vmax.f32 %v734, %v766
  %v799 = vmax.f32 %v735, %v767
  %v800 = vpack.c.bf16 %v769, %v768
  %v801 = vpack.c.bf16 %v771, %v770
  %v802 = vpack.c.bf16 %v773, %v772
  %v803 = vpack.c.bf16 %v775, %v774
  %v804 = vpack.c.bf16 %v777, %v776
  %v805 = vpack.c.bf16 %v779, %v778
  %v806 = vpack.c.bf16 %v781, %v780
  %v807 = vpack.c.bf16 %v783, %v782
  %v808 = vpack.c.bf16 %v785, %v784
  %v809 = vpack.c.bf16 %v787, %v786
  %v810 = vpack.c.bf16 %v789, %v788
  %v811 = vpack.c.bf16 %v791, %v790
  %v812 = vpack.c.bf16 %v793, %v792
  %v813 = vpack.c.bf16 %v795, %v794
  %v814 = vpack.c.bf16 %v797, %v796
  %v815 = vpack.c.bf16 %v799, %v798
  %v816 = vld [vmem:[%s7] sm:$0xff]
  %v817 = vld [vmem:[%s7 + $0x8] sm:$0xff]
  %v818 = vld [vmem:[%s7 + $0x10] sm:$0xff]
  %v819 = vld [vmem:[%s7 + $0x18] sm:$0xff]
  %v820 = vld [vmem:[%s7 + $0x20] sm:$0xff]
  %v821 = vld [vmem:[%s7 + $0x28] sm:$0xff]
  %v822 = vld [vmem:[%s7 + $0x30] sm:$0xff]
  %v823 = vld [vmem:[%s7 + $0x38] sm:$0xff]
  %v824 = vld [vmem:[%s7 + $0x40] sm:$0xff]
  %v825 = vld [vmem:[%s7 + $0x48] sm:$0xff]
  %v826 = vld [vmem:[%s7 + $0x50] sm:$0xff]
  %v827 = vld [vmem:[%s7 + $0x58] sm:$0xff]
  %v828 = vld [vmem:[%s7 + $0x60] sm:$0xff]
  %v829 = vld [vmem:[%s7 + $0x68] sm:$0xff]
  %v830 = vld [vmem:[%s7 + $0x70] sm:$0xff]
  %v831 = vld [vmem:[%s7 + $0x78] sm:$0xff]
  %v832 = vunpack.c.l.bf16 %v800
  %v833 = vunpack.c.h.bf16 %v800
  %v834 = vunpack.c.l.bf16 %v801
  %v835 = vunpack.c.h.bf16 %v801
  %v836 = vunpack.c.l.bf16 %v802
  %v837 = vunpack.c.h.bf16 %v802
  %v838 = vunpack.c.l.bf16 %v803
  %v839 = vunpack.c.h.bf16 %v803
  %v840 = vunpack.c.l.bf16 %v804
  %v841 = vunpack.c.h.bf16 %v804
  %v842 = vunpack.c.l.bf16 %v805
  %v843 = vunpack.c.h.bf16 %v805
  %v844 = vunpack.c.l.bf16 %v806
  %v845 = vunpack.c.h.bf16 %v806
  %v846 = vunpack.c.l.bf16 %v807
  %v847 = vunpack.c.h.bf16 %v807
  %v848 = vunpack.c.l.bf16 %v808
  %v849 = vunpack.c.h.bf16 %v808
  %v850 = vunpack.c.l.bf16 %v809
  %v851 = vunpack.c.h.bf16 %v809
  %v852 = vunpack.c.l.bf16 %v810
  %v853 = vunpack.c.h.bf16 %v810
  %v854 = vunpack.c.l.bf16 %v811
  %v855 = vunpack.c.h.bf16 %v811
  %v856 = vunpack.c.l.bf16 %v812
  %v857 = vunpack.c.h.bf16 %v812
  %v858 = vunpack.c.l.bf16 %v813
  %v859 = vunpack.c.h.bf16 %v813
  %v860 = vunpack.c.l.bf16 %v814
  %v861 = vunpack.c.h.bf16 %v814
  %v862 = vunpack.c.l.bf16 %v815
  %v863 = vunpack.c.h.bf16 %v815
  %v864 = vunpack.c.l.bf16 %v816
  %v865 = vunpack.c.h.bf16 %v816
  %v866 = vunpack.c.l.bf16 %v817
  %v867 = vunpack.c.h.bf16 %v817
  %v868 = vunpack.c.l.bf16 %v818
  %v869 = vunpack.c.h.bf16 %v818
  %v870 = vunpack.c.l.bf16 %v819
  %v871 = vunpack.c.h.bf16 %v819
  %v872 = vunpack.c.l.bf16 %v820
  %v873 = vunpack.c.h.bf16 %v820
  %v874 = vunpack.c.l.bf16 %v821
  %v875 = vunpack.c.h.bf16 %v821
  %v876 = vunpack.c.l.bf16 %v822
  %v877 = vunpack.c.h.bf16 %v822
  %v878 = vunpack.c.l.bf16 %v823
  %v879 = vunpack.c.h.bf16 %v823
  %v880 = vunpack.c.l.bf16 %v824
  %v881 = vunpack.c.h.bf16 %v824
  %v882 = vunpack.c.l.bf16 %v825
  %v883 = vunpack.c.h.bf16 %v825
  %v884 = vunpack.c.l.bf16 %v826
  %v885 = vunpack.c.h.bf16 %v826
  %v886 = vunpack.c.l.bf16 %v827
  %v887 = vunpack.c.h.bf16 %v827
  %v888 = vunpack.c.l.bf16 %v828
  %v889 = vunpack.c.h.bf16 %v828
  %v890 = vunpack.c.l.bf16 %v829
  %v891 = vunpack.c.h.bf16 %v829
  %v892 = vunpack.c.l.bf16 %v830
  %v893 = vunpack.c.h.bf16 %v830
  %v894 = vunpack.c.l.bf16 %v831
  %v895 = vunpack.c.h.bf16 %v831
  %v896 = vmax.f32 %v832, %v864
  %v897 = vmax.f32 %v833, %v865
  %v898 = vmax.f32 %v834, %v866
  %v899 = vmax.f32 %v835, %v867
  %v900 = vmax.f32 %v836, %v868
  %v901 = vmax.f32 %v837, %v869
  %v902 = vmax.f32 %v838, %v870
  %v903 = vmax.f32 %v839, %v871
  %v904 = vmax.f32 %v840, %v872
  %v905 = vmax.f32 %v841, %v873
  %v906 = vmax.f32 %v842, %v874
  %v907 = vmax.f32 %v843, %v875
  %v908 = vmax.f32 %v844, %v876
  %v909 = vmax.f32 %v845, %v877
  %v910 = vmax.f32 %v846, %v878
  %v911 = vmax.f32 %v847, %v879
  %v912 = vmax.f32 %v848, %v880
  %v913 = vmax.f32 %v849, %v881
  %v914 = vmax.f32 %v850, %v882
  %v915 = vmax.f32 %v851, %v883
  %v916 = vmax.f32 %v852, %v884
  %v917 = vmax.f32 %v853, %v885
  %v918 = vmax.f32 %v854, %v886
  %v919 = vmax.f32 %v855, %v887
  %v920 = vmax.f32 %v856, %v888
  %v921 = vmax.f32 %v857, %v889
  %v922 = vmax.f32 %v858, %v890
  %v923 = vmax.f32 %v859, %v891
  %v924 = vmax.f32 %v860, %v892
  %v925 = vmax.f32 %v861, %v893
  %v926 = vmax.f32 %v862, %v894
  %v927 = vmax.f32 %v863, %v895
  %v928 = vpack.c.bf16 %v897, %v896
  %v929 = vpack.c.bf16 %v899, %v898
  %v930 = vpack.c.bf16 %v901, %v900
  %v931 = vpack.c.bf16 %v903, %v902
  %v932 = vpack.c.bf16 %v905, %v904
  %v933 = vpack.c.bf16 %v907, %v906
  %v934 = vpack.c.bf16 %v909, %v908
  %v935 = vpack.c.bf16 %v911, %v910
  %v936 = vpack.c.bf16 %v913, %v912
  %v937 = vpack.c.bf16 %v915, %v914
  %v938 = vpack.c.bf16 %v917, %v916
  %v939 = vpack.c.bf16 %v919, %v918
  %v940 = vpack.c.bf16 %v921, %v920
  %v941 = vpack.c.bf16 %v923, %v922
  %v942 = vpack.c.bf16 %v925, %v924
  %v943 = vpack.c.bf16 %v927, %v926
  %v944 = vld [vmem:[%s8] sm:$0xff]
  %v945 = vld [vmem:[%s8 + $0x8] sm:$0xff]
  %v946 = vld [vmem:[%s8 + $0x10] sm:$0xff]
  %v947 = vld [vmem:[%s8 + $0x18] sm:$0xff]
  %v948 = vld [vmem:[%s8 + $0x20] sm:$0xff]
  %v949 = vld [vmem:[%s8 + $0x28] sm:$0xff]
  %v950 = vld [vmem:[%s8 + $0x30] sm:$0xff]
  %v951 = vld [vmem:[%s8 + $0x38] sm:$0xff]
  %v952 = vld [vmem:[%s8 + $0x40] sm:$0xff]
  %v953 = vld [vmem:[%s8 + $0x48] sm:$0xff]
  %v954 = vld [vmem:[%s8 + $0x50] sm:$0xff]
  %v955 = vld [vmem:[%s8 + $0x58] sm:$0xff]
  %v956 = vld [vmem:[%s8 + $0x60] sm:$0xff]
  %v957 = vld [vmem:[%s8 + $0x68] sm:$0xff]
  %v958 = vld [vmem:[%s8 + $0x70] sm:$0xff]
  %v959 = vld [vmem:[%s8 + $0x78] sm:$0xff]
  %v960 = vunpack.c.l.bf16 %v928
  %v961 = vunpack.c.h.bf16 %v928
  %v962 = vunpack.c.l.bf16 %v929
  %v963 = vunpack.c.h.bf16 %v929
  %v964 = vunpack.c.l.bf16 %v930
  %v965 = vunpack.c.h.bf16 %v930
  %v966 = vunpack.c.l.bf16 %v931
  %v967 = vunpack.c.h.bf16 %v931
  %v968 = vunpack.c.l.bf16 %v932
  %v969 = vunpack.c.h.bf16 %v932
  %v970 = vunpack.c.l.bf16 %v933
  %v971 = vunpack.c.h.bf16 %v933
  %v972 = vunpack.c.l.bf16 %v934
  %v973 = vunpack.c.h.bf16 %v934
  %v974 = vunpack.c.l.bf16 %v935
  %v975 = vunpack.c.h.bf16 %v935
  %v976 = vunpack.c.l.bf16 %v936
  %v977 = vunpack.c.h.bf16 %v936
  %v978 = vunpack.c.l.bf16 %v937
  %v979 = vunpack.c.h.bf16 %v937
  %v980 = vunpack.c.l.bf16 %v938
  %v981 = vunpack.c.h.bf16 %v938
  %v982 = vunpack.c.l.bf16 %v939
  %v983 = vunpack.c.h.bf16 %v939
  %v984 = vunpack.c.l.bf16 %v940
  %v985 = vunpack.c.h.bf16 %v940
  %v986 = vunpack.c.l.bf16 %v941
  %v987 = vunpack.c.h.bf16 %v941
  %v988 = vunpack.c.l.bf16 %v942
  %v989 = vunpack.c.h.bf16 %v942
  %v990 = vunpack.c.l.bf16 %v943
  %v991 = vunpack.c.h.bf16 %v943
  %v992 = vunpack.c.l.bf16 %v944
  %v993 = vunpack.c.h.bf16 %v944
  %v994 = vunpack.c.l.bf16 %v945
  %v995 = vunpack.c.h.bf16 %v945
  %v996 = vunpack.c.l.bf16 %v946
  %v997 = vunpack.c.h.bf16 %v946
  %v998 = vunpack.c.l.bf16 %v947
  %v999 = vunpack.c.h.bf16 %v947
  %v1000 = vunpack.c.l.bf16 %v948
  %v1001 = vunpack.c.h.bf16 %v948
  %v1002 = vunpack.c.l.bf16 %v949
  %v1003 = vunpack.c.h.bf16 %v949
  %v1004 = vunpack.c.l.bf16 %v950
  %v1005 = vunpack.c.h.bf16 %v950
  %v1006 = vunpack.c.l.bf16 %v951
  %v1007 = vunpack.c.h.bf16 %v951
  %v1008 = vunpack.c.l.bf16 %v952
  %v1009 = vunpack.c.h.bf16 %v952
  %v1010 = vunpack.c.l.bf16 %v953
  %v1011 = vunpack.c.h.bf16 %v953
  %v1012 = vunpack.c.l.bf16 %v954
  %v1013 = vunpack.c.h.bf16 %v954
  %v1014 = vunpack.c.l.bf16 %v955
  %v1015 = vunpack.c.h.bf16 %v955
  %v1016 = vunpack.c.l.bf16 %v956
  %v1017 = vunpack.c.h.bf16 %v956
  %v1018 = vunpack.c.l.bf16 %v957
  %v1019 = vunpack.c.h.bf16 %v957
  %v1020 = vunpack.c.l.bf16 %v958
  %v1021 = vunpack.c.h.bf16 %v958
  %v1022 = vunpack.c.l.bf16 %v959
  %v1023 = vunpack.c.h.bf16 %v959
  %v1024 = vmax.f32 %v960, %v992
  %v1025 = vmax.f32 %v961, %v993
  %v1026 = vmax.f32 %v962, %v994
  %v1027 = vmax.f32 %v963, %v995
  %v1028 = vmax.f32 %v964, %v996
  %v1029 = vmax.f32 %v965, %v997
  %v1030 = vmax.f32 %v966, %v998
  %v1031 = vmax.f32 %v967, %v999
  %v1032 = vmax.f32 %v968, %v1000
  %v1033 = vmax.f32 %v969, %v1001
  %v1034 = vmax.f32 %v970, %v1002
  %v1035 = vmax.f32 %v971, %v1003
  %v1036 = vmax.f32 %v972, %v1004
  %v1037 = vmax.f32 %v973, %v1005
  %v1038 = vmax.f32 %v974, %v1006
  %v1039 = vmax.f32 %v975, %v1007
  %v1040 = vmax.f32 %v976, %v1008
  %v1041 = vmax.f32 %v977, %v1009
  %v1042 = vmax.f32 %v978, %v1010
  %v1043 = vmax.f32 %v979, %v1011
  %v1044 = vmax.f32 %v980, %v1012
  %v1045 = vmax.f32 %v981, %v1013
  %v1046 = vmax.f32 %v982, %v1014
  %v1047 = vmax.f32 %v983, %v1015
  %v1048 = vmax.f32 %v984, %v1016
  %v1049 = vmax.f32 %v985, %v1017
  %v1050 = vmax.f32 %v986, %v1018
  %v1051 = vmax.f32 %v987, %v1019
  %v1052 = vmax.f32 %v988, %v1020
  %v1053 = vmax.f32 %v989, %v1021
  %v1054 = vmax.f32 %v990, %v1022
  %v1055 = vmax.f32 %v991, %v1023
  %v1056 = vpack.c.bf16 %v1025, %v1024
  %v1057 = vpack.c.bf16 %v1027, %v1026
  %v1058 = vpack.c.bf16 %v1029, %v1028
  %v1059 = vpack.c.bf16 %v1031, %v1030
  %v1060 = vpack.c.bf16 %v1033, %v1032
  %v1061 = vpack.c.bf16 %v1035, %v1034
  %v1062 = vpack.c.bf16 %v1037, %v1036
  %v1063 = vpack.c.bf16 %v1039, %v1038
  %v1064 = vpack.c.bf16 %v1041, %v1040
  %v1065 = vpack.c.bf16 %v1043, %v1042
  %v1066 = vpack.c.bf16 %v1045, %v1044
  %v1067 = vpack.c.bf16 %v1047, %v1046
  %v1068 = vpack.c.bf16 %v1049, %v1048
  %v1069 = vpack.c.bf16 %v1051, %v1050
  %v1070 = vpack.c.bf16 %v1053, %v1052
  %v1071 = vpack.c.bf16 %v1055, %v1054
  %1072 = vst [vmem:[%s9] sm:$0xff] %v1056
  %1073 = vst [vmem:[%s9 + $0x8] sm:$0xff] %v1057
  %1074 = vst [vmem:[%s9 + $0x10] sm:$0xff] %v1058
  %1075 = vst [vmem:[%s9 + $0x18] sm:$0xff] %v1059
  %1076 = vst [vmem:[%s9 + $0x20] sm:$0xff] %v1060
  %1077 = vst [vmem:[%s9 + $0x28] sm:$0xff] %v1061
  %1078 = vst [vmem:[%s9 + $0x30] sm:$0xff] %v1062
  %1079 = vst [vmem:[%s9 + $0x38] sm:$0xff] %v1063
  %1080 = vst [vmem:[%s9 + $0x40] sm:$0xff] %v1064
  %1081 = vst [vmem:[%s9 + $0x48] sm:$0xff] %v1065
  %1082 = vst [vmem:[%s9 + $0x50] sm:$0xff] %v1066
  %1083 = vst [vmem:[%s9 + $0x58] sm:$0xff] %v1067
  %1084 = vst [vmem:[%s9 + $0x60] sm:$0xff] %v1068
  %1085 = vst [vmem:[%s9 + $0x68] sm:$0xff] %v1069
  %1086 = vst [vmem:[%s9 + $0x70] sm:$0xff] %v1070
  %1087 = vst [vmem:[%s9 + $0x78] sm:$0xff] %v1071
  // Predicated region
  $region38: #{_jit_stem.3} parent=0 // pred_check
    _
  $region39: #{_jit_stem.3} parent=0 // pred_check_branch
    %1089 = sbr.rel (0) target = $region41
  $region40: #{_jit_stem.3} parent=0 // pred_region
    _
  $region41: #{_jit_stem.3} parent=0 // pred_fallthru
    _
  // Predicated region
  $region42: #{_jit_stem.3} parent=0 // pred_check
    _
  $region43: #{_jit_stem.3} parent=0 // pred_check_branch
    %1091 = sbr.rel (0) target = $region45
  $region44: #{_jit_stem.3} parent=0 // pred_region
    _
  $region45: #{_jit_stem.3} parent=0 // pred_fallthru
    _

</llo_original>
